<compile_context>
chip_gen: v7x
topology: tpu7x:2x2x1
jax: 0.10.0
libtpu: 0.0.40
codegen_flags: <defaults>
</compile_context>

<pallas_src>
import jax
import jax.numpy as jnp
from jax.experimental import pallas as pl
from jax.experimental.pallas import tpu as pltpu


def _factor_lanes(n):
    """Factor the flattened per-video extent N into (rows, lanes)."""
    if n % 128 == 0:
        return n // 128, 128
    # N not a multiple of 128: keep the blocks pipelineable by picking the
    # largest divisor of N (<= 2048) as the lane extent.  The block's last
    # dim then equals the full array extent, which is always a legal shape.
    # TODO(synk): a padded-and-masked 128-lane path would restore full vst
    # efficiency for these odd shapes.
    best = 1
    for cand in range(1, min(n, 2048) + 1):
        if n % cand == 0:
            best = cand
    return n // best, best


def _min_sublane(dtype):
    """Native sublane multiple for a dtype: f32 -> 8, bf16 -> 16, 8-bit -> 32."""
    return max(8, 32 // jnp.dtype(dtype).itemsize)


def _pick_row_tile(r, max_rows, sublane):
    """Largest row-tile dividing r that is a multiple of `sublane` and <= max_rows."""
    if r <= max_rows:
        return r
    t = (max_rows // sublane) * sublane
    while t >= sublane:
        if r % t == 0:
            return t
        t -= sublane
    return r


def _depth_hist_kernel(x_ref, w_ref, b_ref, hist_ref, d_scratch):
    """Pass 1: surrogate depth (folded '(x+1)/2' + 1x1 conv + sigmoid) + histogram.

    x_ref:    (1, C, tile_r, L) VMEM, input dtype
    w_ref:    (C,) SMEM f32  (weights pre-scaled by 0.5)
    b_ref:    (1,) SMEM f32  (bias + 0.5 * sum(w))
    hist_ref: (1, 1, nbins, L) VMEM f32 output block, accumulated over the
              innermost ("arbitrary") grid axis; lanes are reduced on host.
    d_scratch:(tile_r, L) VMEM f32
    """
    # TODO(synk): the real ZoeDepth backbone (pretrained MiDaS encoder +
    # metric-bins heads from ZoeD_M12_N.pt) has no in-script equivalent; this
    # deterministic 1x1-conv + sigmoid surrogate stands in so the surrounding
    # forward semantics (rescale, percentile normalize, repeat) are exact.
    c_dim = x_ref.shape[1]
    nbins = hist_ref.shape[2]
    tile_r, lanes = d_scratch.shape

    acc = x_ref[0, 0].astype(jnp.float32) * w_ref[0]
    for c in range(1, c_dim):                                   # static, C == 3
        acc = acc + x_ref[0, c].astype(jnp.float32) * w_ref[c]
    # exact sigmoid (EUP exp + f32 divide) for parity with torch.sigmoid
    d_scratch[...] = 1.0 / (1.0 + jnp.exp(-(acc + b_ref[0])))

    # Histogram: bins along sublanes, data row broadcast across them.  Pure
    # VPU compare+add, no scatters, no cross-lane reduces, no dynamic stores.
    bin_iota = jax.lax.broadcasted_iota(jnp.int32, (nbins, lanes), 0)
    nbins_f = jnp.float32(nbins)

    def row_body(r, h):
        row = d_scratch[pl.ds(r, 1), :]                          # (1, L)
        bidx = jnp.minimum(jnp.floor(row * nbins_f).astype(jnp.int32), nbins - 1)
        return h + (bin_iota == bidx).astype(jnp.float32)

    hist = jax.lax.fori_loop(0, tile_r, row_body,
                             jnp.zeros((nbins, lanes), jnp.float32), unroll=8)

    @pl.when(pl.program_id(2) == 0)
    def _():
        hist_ref[...] = jnp.zeros_like(hist_ref)

    hist_ref[0, 0] += hist


def _normalize_kernel(x_ref, w_ref, b_ref, scale_ref, offset_ref, o_ref):
    """Pass 2: recompute depth, per-video affine + clamp, 3x channel repeat.

    x_ref: (1, C, tile_r, L) VMEM; w/b/scale/offset in SMEM;
    o_ref: (1, 3, tile_r, L) VMEM in the caller's dtype.
    """
    b = pl.program_id(0)
    c_dim = x_ref.shape[1]
    acc = x_ref[0, 0].astype(jnp.float32) * w_ref[0]
    for c in range(1, c_dim):
        acc = acc + x_ref[0, c].astype(jnp.float32) * w_ref[c]
    d = 1.0 / (1.0 + jnp.exp(-(acc + b_ref[0])))
    y = jnp.clip(d * scale_ref[b] + offset_ref[b], -1.0, 1.0).astype(o_ref.dtype)
    # Three dense full-width slab stores (the 3x repeat is part of the module's
    # forward semantics, so it is materialized).
    o_ref[0, 0] = y
    o_ref[0, 1] = y
    o_ref[0, 2] = y


def depth_zoe_encode(x, w, bias, *, max_rows_per_tile=2048, nbins=256):
    """x: (B, C, T, H, W) in [-1, 1].  Returns (B, 3, T, H, W) in x.dtype."""
    assert nbins % 8 == 0
    in_dtype = x.dtype
    B, C, T, H, W = x.shape
    N = T * H * W

    R, L = _factor_lanes(N)
    sublane = _min_sublane(in_dtype)
    tile_r = _pick_row_tile(R, max_rows_per_tile, sublane)
    grid_r = R // tile_r
    # Outer parallel chunk so v7x's two TensorCores split pass 1 even for B==1.
    P = 2 if (grid_r % 2 == 0 and grid_r >= 2) else 1
    J = grid_r // P

    # Transpose-free, lane-dense view: pure reshape along contiguous (t,h,w).
    x_f = x.reshape(B, C, R, L)

    # Fold '(x + 1) / 2' into the surrogate 1x1-conv parameters.
    w32 = w.astype(jnp.float32).reshape(-1)
    w_eff = 0.5 * w32
    b_eff = bias.astype(jnp.float32).reshape(-1)[:1] + 0.5 * jnp.sum(w32)

    vmem_limit = 48 * 1024 * 1024   # leaves headroom under v7x's 64 MiB/TC VMEM

    # ---- Pass 1: depth surrogate + per-video histogram (no depth HBM write).
    hist = pl.pallas_call(
        _depth_hist_kernel,
        out_shape=jax.ShapeDtypeStruct((B, P, nbins, L), jnp.float32),
        grid=(B, P, J),
        in_specs=[
            pl.BlockSpec((1, C, tile_r, L), lambda b, p, j: (b, 0, p * J + j, 0)),
            pl.BlockSpec(memory_space=pltpu.MemorySpace.SMEM),
            pl.BlockSpec(memory_space=pltpu.MemorySpace.SMEM),
        ],
        out_specs=pl.BlockSpec((1, 1, nbins, L), lambda b, p, j: (b, p, 0, 0)),
        scratch_shapes=[pltpu.VMEM((tile_r, L), jnp.float32)],
        compiler_params=pltpu.CompilerParams(
            dimension_semantics=("parallel", "parallel", "arbitrary"),
            vmem_limit_bytes=vmem_limit),
    )(x_f, w_eff, b_eff)

    # ---- Tiny host-side reduction: CDF + interpolated order statistics.
    counts = hist.sum(axis=(1, 3))                   # (B, nbins)
    cdf = jnp.cumsum(counts, axis=-1)

    # torch.kthvalue semantics (1-indexed k over the flattened per-video map).
    k2 = max(int(0.02 * N), 1)
    k85 = max(int(0.85 * N), 1)

    def kth_value(k):
        # TODO(synk): bin-interpolated approximation of the exact torch.kthvalue
        # order statistic (max error ~ one bin width = 1/nbins of the sigmoid range).
        kf = jnp.float32(k)
        j = jnp.sum((cdf < kf).astype(jnp.int32), axis=-1)       # first bin with cdf >= k
        j = jnp.clip(j, 0, nbins - 1)
        cdf_before = jnp.where(
            j > 0,
            jnp.take_along_axis(cdf, jnp.maximum(j - 1, 0)[:, None], axis=-1)[:, 0],
            0.0)
        cnt = jnp.take_along_axis(counts, j[:, None], axis=-1)[:, 0]
        frac = jnp.clip((kf - cdf_before) / jnp.maximum(cnt, 1.0), 0.0, 1.0)
        return (j.astype(jnp.float32) + frac) / jnp.float32(nbins)

    vmin = kth_value(k2)
    vmax = kth_value(k85)

    # Precompute per-video affine so pass 2 does one mul+add+clip per element:
    #   clamp((d - vmin)/(vmax - vmin), 0, 1) * 2 - 1 == clamp(d*scale + offset, -1, 1)
    denom = vmax - vmin
    denom = jnp.where(denom > 0, denom, jnp.ones_like(denom))    # vmax==vmin guard
    scale = (2.0 / denom).astype(jnp.float32)
    offset = (-2.0 * vmin / denom - 1.0).astype(jnp.float32)

    # ---- Pass 2: recompute depth, normalize, clamp, 3x repeat.
    out = pl.pallas_call(
        _normalize_kernel,
        out_shape=jax.ShapeDtypeStruct((B, 3, R, L), in_dtype),
        grid=(B, grid_r),
        in_specs=[
            pl.BlockSpec((1, C, tile_r, L), lambda b, j: (b, 0, j, 0)),
            pl.BlockSpec(memory_space=pltpu.MemorySpace.SMEM),
            pl.BlockSpec(memory_space=pltpu.MemorySpace.SMEM),
            pl.BlockSpec(memory_space=pltpu.MemorySpace.SMEM),
            pl.BlockSpec(memory_space=pltpu.MemorySpace.SMEM),
        ],
        out_specs=pl.BlockSpec((1, 3, tile_r, L), lambda b, j: (b, 0, j, 0)),
        compiler_params=pltpu.CompilerParams(
            dimension_semantics=("parallel", "parallel"),
            vmem_limit_bytes=vmem_limit),
    )(x_f, w_eff, b_eff, scale, offset)

    # 'b c r l -> b c t h w' (pure reshape; flat order matches torch's view).
    return out.reshape(B, 3, T, H, W)


if __name__ == "__main__":
    key = jax.random.PRNGKey(0)
    B, C, T, H, W = 2, 3, 4, 16, 16
    x = jax.random.uniform(key, (B, C, T, H, W), jnp.float32,
                           minval=-1.0, maxval=1.0)
    # deterministic surrogate depth-head parameters (luma-style weights + bias)
    w = jnp.array([0.2126, 0.7152, 0.0722], jnp.float32)
    bias = jnp.array([0.1], jnp.float32)

    out = depth_zoe_encode(x, w, bias)
    out = jax.block_until_ready(out)
    assert out.shape == (B, 3, T, H, W), out.shape
    assert out.dtype == x.dtype
    assert bool(jnp.all(jnp.isfinite(out)))
    assert bool(jnp.all(out >= -1.0)) and bool(jnp.all(out <= 1.0))
    # the three output channels are an exact repeat of the single depth map
    assert bool(jnp.all(out[:, 0] == out[:, 1]))
    assert bool(jnp.all(out[:, 1] == out[:, 2]))
    print("KERNEL_OK")
</pallas_src>

<mosaic_0001>
module attributes {stable_mosaic.version = 11 : i64} {
  func.func @_depth_hist_kernel(%arg0: i32, %arg1: i32, %arg2: i32, %arg3: memref<1x3x8x128xf32, #tpu.memory_space<vmem>>, %arg4: memref<3xf32, #tpu.memory_space<smem>>, %arg5: memref<1xf32, #tpu.memory_space<smem>>, %arg6: memref<1x1x256x128xf32, #tpu.memory_space<vmem>>, %arg7: memref<8x128xf32, #tpu.memory_space<vmem>>) attributes {dimension_semantics = [#tpu.dimension_semantics<parallel>, #tpu.dimension_semantics<parallel>, #tpu.dimension_semantics<arbitrary>], iteration_bounds = array<i64: 2, 1, 1>, scalar_prefetch = 0 : i64, scratch_operands = 1 : i64, tpu.core_type = #tpu.core_type<tc>, window_params = [{transform_indices = @transform_0, window_bounds = array<i64: 1, 3, 8, 128>}, {transform_indices = @transform_1, window_bounds = array<i64: 3>}, {transform_indices = @transform_2, window_bounds = array<i64: 1>}, {transform_indices = @transform_3, window_bounds = array<i64: 1, 1, 256, 128>}]} {
    %c0 = arith.constant 0 : index
    %c0_0 = arith.constant 0 : index
    %c0_1 = arith.constant 0 : index
    %c0_2 = arith.constant 0 : index
    %0 = vector.load %arg3[%c0, %c0_0, %c0_1, %c0_2] : memref<1x3x8x128xf32, #tpu.memory_space<vmem>>, vector<1x1x8x128xf32>
    %1 = vector.shape_cast %0 : vector<1x1x8x128xf32> to vector<8x128xf32>
    %c0_3 = arith.constant 0 : index
    %2 = memref.load %arg4[%c0_3] : memref<3xf32, #tpu.memory_space<smem>>
    %3 = vector.broadcast %2 : f32 to vector<8x128xf32>
    %4 = arith.mulf %1, %3 : vector<8x128xf32>
    %c0_4 = arith.constant 0 : index
    %c1 = arith.constant 1 : index
    %c0_5 = arith.constant 0 : index
    %c0_6 = arith.constant 0 : index
    %5 = vector.load %arg3[%c0_4, %c1, %c0_5, %c0_6] : memref<1x3x8x128xf32, #tpu.memory_space<vmem>>, vector<1x1x8x128xf32>
    %6 = vector.shape_cast %5 : vector<1x1x8x128xf32> to vector<8x128xf32>
    %c1_7 = arith.constant 1 : index
    %7 = memref.load %arg4[%c1_7] : memref<3xf32, #tpu.memory_space<smem>>
    %8 = vector.broadcast %7 : f32 to vector<8x128xf32>
    %9 = arith.mulf %6, %8 : vector<8x128xf32>
    %10 = arith.addf %4, %9 : vector<8x128xf32>
    %c0_8 = arith.constant 0 : index
    %c2 = arith.constant 2 : index
    %c0_9 = arith.constant 0 : index
    %c0_10 = arith.constant 0 : index
    %11 = vector.load %arg3[%c0_8, %c2, %c0_9, %c0_10] : memref<1x3x8x128xf32, #tpu.memory_space<vmem>>, vector<1x1x8x128xf32>
    %12 = vector.shape_cast %11 : vector<1x1x8x128xf32> to vector<8x128xf32>
    %c2_11 = arith.constant 2 : index
    %13 = memref.load %arg4[%c2_11] : memref<3xf32, #tpu.memory_space<smem>>
    %14 = vector.broadcast %13 : f32 to vector<8x128xf32>
    %15 = arith.mulf %12, %14 : vector<8x128xf32>
    %16 = arith.addf %10, %15 : vector<8x128xf32>
    %c0_12 = arith.constant 0 : index
    %17 = memref.load %arg5[%c0_12] : memref<1xf32, #tpu.memory_space<smem>>
    %18 = vector.broadcast %17 : f32 to vector<8x128xf32>
    %19 = arith.addf %16, %18 : vector<8x128xf32>
    %cst = arith.constant 0.000000e+00 : f32
    %20 = vector.broadcast %cst : f32 to vector<8x128xf32>
    %21 = arith.subf %20, %19 : vector<8x128xf32>
    %22 = math.exp %21 : vector<8x128xf32>
    %cst_13 = arith.constant 1.000000e+00 : f32
    %23 = vector.broadcast %cst_13 : f32 to vector<8x128xf32>
    %24 = arith.addf %23, %22 : vector<8x128xf32>
    %cst_14 = arith.constant 1.000000e+00 : f32
    %25 = vector.broadcast %cst_14 : f32 to vector<8x128xf32>
    %26 = arith.divf %25, %24 : vector<8x128xf32>
    %c0_15 = arith.constant 0 : index
    %c0_16 = arith.constant 0 : index
    %27 = vector.load %arg7[%c0_15, %c0_16] : memref<8x128xf32, #tpu.memory_space<vmem>>, vector<8x128xf32>
    tpu.vector_store %arg7[%c0_15, %c0_16], %26 {strides = array<i32>} : memref<8x128xf32, #tpu.memory_space<vmem>>, vector<8x128xf32>,
    %28 = tpu.iota {dimensions = array<i32: 0>} : vector<256x128xi32>
    %cst_17 = arith.constant 0.000000e+00 : f32
    %29 = vector.broadcast %cst_17 : f32 to vector<256x128xf32>
    %cst_18 = arith.constant 2.560000e+02 : f32
    %c0_i32 = arith.constant 0 : i32
    %30 = arith.index_cast %c0_i32 : i32 to index
    %c0_19 = arith.constant 0 : index
    %31 = vector.load %arg7[%30, %c0_19] : memref<8x128xf32, #tpu.memory_space<vmem>>, vector<1x128xf32>
    %32 = vector.broadcast %cst_18 : f32 to vector<1x128xf32>
    %33 = arith.mulf %31, %32 : vector<1x128xf32>
    %34 = math.floor %33 : vector<1x128xf32>
    %35 = arith.fptosi %34 : vector<1x128xf32> to vector<1x128xi32>
    %c255_i32 = arith.constant 255 : i32
    %36 = vector.broadcast %c255_i32 : i32 to vector<1x128xi32>
    %37 = arith.minsi %35, %36 : vector<1x128xi32>
    %38 = vector.broadcast %37 : vector<1x128xi32> to vector<256x128xi32>
    %39 = arith.cmpi eq, %28, %38 : vector<256x128xi32>
    %40 = arith.extui %39 : vector<256x128xi1> to vector<256x128xi32>
    %41 = arith.sitofp %40 : vector<256x128xi32> to vector<256x128xf32>
    %42 = arith.addf %29, %41 : vector<256x128xf32>
    %c1_i32 = arith.constant 1 : i32
    %43 = arith.index_cast %c1_i32 : i32 to index
    %c0_20 = arith.constant 0 : index
    %44 = vector.load %arg7[%43, %c0_20] : memref<8x128xf32, #tpu.memory_space<vmem>>, vector<1x128xf32>
    %45 = vector.broadcast %cst_18 : f32 to vector<1x128xf32>
    %46 = arith.mulf %44, %45 : vector<1x128xf32>
    %47 = math.floor %46 : vector<1x128xf32>
    %48 = arith.fptosi %47 : vector<1x128xf32> to vector<1x128xi32>
    %c255_i32_21 = arith.constant 255 : i32
    %49 = vector.broadcast %c255_i32_21 : i32 to vector<1x128xi32>
    %50 = arith.minsi %48, %49 : vector<1x128xi32>
    %51 = vector.broadcast %50 : vector<1x128xi32> to vector<256x128xi32>
    %52 = arith.cmpi eq, %28, %51 : vector<256x128xi32>
    %53 = arith.extui %52 : vector<256x128xi1> to vector<256x128xi32>
    %54 = arith.sitofp %53 : vector<256x128xi32> to vector<256x128xf32>
    %55 = arith.addf %42, %54 : vector<256x128xf32>
    %c2_i32 = arith.constant 2 : i32
    %56 = arith.index_cast %c2_i32 : i32 to index
    %c0_22 = arith.constant 0 : index
    %57 = vector.load %arg7[%56, %c0_22] : memref<8x128xf32, #tpu.memory_space<vmem>>, vector<1x128xf32>
    %58 = vector.broadcast %cst_18 : f32 to vector<1x128xf32>
    %59 = arith.mulf %57, %58 : vector<1x128xf32>
    %60 = math.floor %59 : vector<1x128xf32>
    %61 = arith.fptosi %60 : vector<1x128xf32> to vector<1x128xi32>
    %c255_i32_23 = arith.constant 255 : i32
    %62 = vector.broadcast %c255_i32_23 : i32 to vector<1x128xi32>
    %63 = arith.minsi %61, %62 : vector<1x128xi32>
    %64 = vector.broadcast %63 : vector<1x128xi32> to vector<256x128xi32>
    %65 = arith.cmpi eq, %28, %64 : vector<256x128xi32>
    %66 = arith.extui %65 : vector<256x128xi1> to vector<256x128xi32>
    %67 = arith.sitofp %66 : vector<256x128xi32> to vector<256x128xf32>
    %68 = arith.addf %55, %67 : vector<256x128xf32>
    %c3_i32 = arith.constant 3 : i32
    %69 = arith.index_cast %c3_i32 : i32 to index
    %c0_24 = arith.constant 0 : index
    %70 = vector.load %arg7[%69, %c0_24] : memref<8x128xf32, #tpu.memory_space<vmem>>, vector<1x128xf32>
    %71 = vector.broadcast %cst_18 : f32 to vector<1x128xf32>
    %72 = arith.mulf %70, %71 : vector<1x128xf32>
    %73 = math.floor %72 : vector<1x128xf32>
    %74 = arith.fptosi %73 : vector<1x128xf32> to vector<1x128xi32>
    %c255_i32_25 = arith.constant 255 : i32
    %75 = vector.broadcast %c255_i32_25 : i32 to vector<1x128xi32>
    %76 = arith.minsi %74, %75 : vector<1x128xi32>
    %77 = vector.broadcast %76 : vector<1x128xi32> to vector<256x128xi32>
    %78 = arith.cmpi eq, %28, %77 : vector<256x128xi32>
    %79 = arith.extui %78 : vector<256x128xi1> to vector<256x128xi32>
    %80 = arith.sitofp %79 : vector<256x128xi32> to vector<256x128xf32>
    %81 = arith.addf %68, %80 : vector<256x128xf32>
    %c4_i32 = arith.constant 4 : i32
    %82 = arith.index_cast %c4_i32 : i32 to index
    %c0_26 = arith.constant 0 : index
    %83 = vector.load %arg7[%82, %c0_26] : memref<8x128xf32, #tpu.memory_space<vmem>>, vector<1x128xf32>
    %84 = vector.broadcast %cst_18 : f32 to vector<1x128xf32>
    %85 = arith.mulf %83, %84 : vector<1x128xf32>
    %86 = math.floor %85 : vector<1x128xf32>
    %87 = arith.fptosi %86 : vector<1x128xf32> to vector<1x128xi32>
    %c255_i32_27 = arith.constant 255 : i32
    %88 = vector.broadcast %c255_i32_27 : i32 to vector<1x128xi32>
    %89 = arith.minsi %87, %88 : vector<1x128xi32>
    %90 = vector.broadcast %89 : vector<1x128xi32> to vector<256x128xi32>
    %91 = arith.cmpi eq, %28, %90 : vector<256x128xi32>
    %92 = arith.extui %91 : vector<256x128xi1> to vector<256x128xi32>
    %93 = arith.sitofp %92 : vector<256x128xi32> to vector<256x128xf32>
    %94 = arith.addf %81, %93 : vector<256x128xf32>
    %c5_i32 = arith.constant 5 : i32
    %95 = arith.index_cast %c5_i32 : i32 to index
    %c0_28 = arith.constant 0 : index
    %96 = vector.load %arg7[%95, %c0_28] : memref<8x128xf32, #tpu.memory_space<vmem>>, vector<1x128xf32>
    %97 = vector.broadcast %cst_18 : f32 to vector<1x128xf32>
    %98 = arith.mulf %96, %97 : vector<1x128xf32>
    %99 = math.floor %98 : vector<1x128xf32>
    %100 = arith.fptosi %99 : vector<1x128xf32> to vector<1x128xi32>
    %c255_i32_29 = arith.constant 255 : i32
    %101 = vector.broadcast %c255_i32_29 : i32 to vector<1x128xi32>
    %102 = arith.minsi %100, %101 : vector<1x128xi32>
    %103 = vector.broadcast %102 : vector<1x128xi32> to vector<256x128xi32>
    %104 = arith.cmpi eq, %28, %103 : vector<256x128xi32>
    %105 = arith.extui %104 : vector<256x128xi1> to vector<256x128xi32>
    %106 = arith.sitofp %105 : vector<256x128xi32> to vector<256x128xf32>
    %107 = arith.addf %94, %106 : vector<256x128xf32>
    %c6_i32 = arith.constant 6 : i32
    %108 = arith.index_cast %c6_i32 : i32 to index
    %c0_30 = arith.constant 0 : index
    %109 = vector.load %arg7[%108, %c0_30] : memref<8x128xf32, #tpu.memory_space<vmem>>, vector<1x128xf32>
    %110 = vector.broadcast %cst_18 : f32 to vector<1x128xf32>
    %111 = arith.mulf %109, %110 : vector<1x128xf32>
    %112 = math.floor %111 : vector<1x128xf32>
    %113 = arith.fptosi %112 : vector<1x128xf32> to vector<1x128xi32>
    %c255_i32_31 = arith.constant 255 : i32
    %114 = vector.broadcast %c255_i32_31 : i32 to vector<1x128xi32>
    %115 = arith.minsi %113, %114 : vector<1x128xi32>
    %116 = vector.broadcast %115 : vector<1x128xi32> to vector<256x128xi32>
    %117 = arith.cmpi eq, %28, %116 : vector<256x128xi32>
    %118 = arith.extui %117 : vector<256x128xi1> to vector<256x128xi32>
    %119 = arith.sitofp %118 : vector<256x128xi32> to vector<256x128xf32>
    %120 = arith.addf %107, %119 : vector<256x128xf32>
    %c7_i32 = arith.constant 7 : i32
    %121 = arith.index_cast %c7_i32 : i32 to index
    %c0_32 = arith.constant 0 : index
    %122 = vector.load %arg7[%121, %c0_32] : memref<8x128xf32, #tpu.memory_space<vmem>>, vector<1x128xf32>
    %123 = vector.broadcast %cst_18 : f32 to vector<1x128xf32>
    %124 = arith.mulf %122, %123 : vector<1x128xf32>
    %125 = math.floor %124 : vector<1x128xf32>
    %126 = arith.fptosi %125 : vector<1x128xf32> to vector<1x128xi32>
    %c255_i32_33 = arith.constant 255 : i32
    %127 = vector.broadcast %c255_i32_33 : i32 to vector<1x128xi32>
    %128 = arith.minsi %126, %127 : vector<1x128xi32>
    %129 = vector.broadcast %128 : vector<1x128xi32> to vector<256x128xi32>
    %130 = arith.cmpi eq, %28, %129 : vector<256x128xi32>
    %131 = arith.extui %130 : vector<256x128xi1> to vector<256x128xi32>
    %132 = arith.sitofp %131 : vector<256x128xi32> to vector<256x128xf32>
    %133 = arith.addf %120, %132 : vector<256x128xf32>
    %c8_i32 = arith.constant 8 : i32
    %c0_i32_34 = arith.constant 0 : i32
    %134 = arith.cmpi eq, %arg2, %c0_i32_34 : i32
    %135 = arith.extui %134 : i1 to i32
    %c0_i32_35 = arith.constant 0 : i32
    %136 = arith.cmpi ne, %135, %c0_i32_35 : i32
    scf.if %136 {
      %cst_44 = arith.constant 0.000000e+00 : f32
      %143 = vector.broadcast %cst_44 : f32 to vector<1x1x256x128xf32>
      %c0_45 = arith.constant 0 : index
      %c0_46 = arith.constant 0 : index
      %c0_47 = arith.constant 0 : index
      %c0_48 = arith.constant 0 : index
      %144 = vector.load %arg6[%c0_45, %c0_46, %c0_47, %c0_48] : memref<1x1x256x128xf32, #tpu.memory_space<vmem>>, vector<1x1x256x128xf32>
      tpu.vector_store %arg6[%c0_45, %c0_46, %c0_47, %c0_48], %143 {strides = array<i32>} : memref<1x1x256x128xf32, #tpu.memory_space<vmem>>, vector<1x1x256x128xf32>,
    } else {
    }
    %c0_36 = arith.constant 0 : index
    %c0_37 = arith.constant 0 : index
    %c0_38 = arith.constant 0 : index
    %c0_39 = arith.constant 0 : index
    %137 = vector.load %arg6[%c0_36, %c0_37, %c0_38, %c0_39] : memref<1x1x256x128xf32, #tpu.memory_space<vmem>>, vector<1x1x256x128xf32>
    %138 = vector.shape_cast %137 : vector<1x1x256x128xf32> to vector<256x128xf32>
    %139 = arith.addf %138, %133 : vector<256x128xf32>
    %c0_40 = arith.constant 0 : index
    %c0_41 = arith.constant 0 : index
    %c0_42 = arith.constant 0 : index
    %c0_43 = arith.constant 0 : index
    %140 = vector.load %arg6[%c0_40, %c0_41, %c0_42, %c0_43] : memref<1x1x256x128xf32, #tpu.memory_space<vmem>>, vector<1x1x256x128xf32>
    %141 = vector.shape_cast %140 : vector<1x1x256x128xf32> to vector<256x128xf32>
    %142 = vector.shape_cast %139 : vector<256x128xf32> to vector<1x1x256x128xf32>
    tpu.vector_store %arg6[%c0_40, %c0_41, %c0_42, %c0_43], %142 {strides = array<i32>} : memref<1x1x256x128xf32, #tpu.memory_space<vmem>>, vector<1x1x256x128xf32>,
    return
  }
  func.func @transform_0(%arg0: i32, %arg1: i32, %arg2: i32) -> (i32, i32, i32, i32) {
    %c1_i32 = arith.constant 1 : i32
    %0 = arith.muli %arg1, %c1_i32 : i32
    %1 = arith.addi %0, %arg2 : i32
    %c0_i32 = arith.constant 0 : i32
    %c0_i32_0 = arith.constant 0 : i32
    %c0_i32_1 = arith.constant 0 : i32
    return %arg0, %c0_i32, %1, %c0_i32_0 : i32, i32, i32, i32
  }
  func.func @transform_1(%arg0: i32, %arg1: i32, %arg2: i32) -> i32 {
    %c0_i32 = arith.constant 0 : i32
    %c0_i32_0 = arith.constant 0 : i32
    return %c0_i32 : i32
  }
  func.func @transform_2(%arg0: i32, %arg1: i32, %arg2: i32) -> i32 {
    %c0_i32 = arith.constant 0 : i32
    %c0_i32_0 = arith.constant 0 : i32
    return %c0_i32 : i32
  }
  func.func @transform_3(%arg0: i32, %arg1: i32, %arg2: i32) -> (i32, i32, i32, i32) {
    %c0_i32 = arith.constant 0 : i32
    %c0_i32_0 = arith.constant 0 : i32
    %c0_i32_1 = arith.constant 0 : i32
    return %arg0, %arg1, %c0_i32, %c0_i32_0 : i32, i32, i32, i32
  }
}

</mosaic_0001>

<llo_original>
// kernel: tpu_custom_call.1
$region0: #{tpu_custom_call.1}
  #allocation0 [shape = 'u32[]', space=smem, size = 0x4, offset = 0x4, fixed_abs, tag = 'smem constant byte address 0x4 - core index']
  #allocation1 [shape = 'u32[144,128]{1,0:T(1,128)}', space=vmem, size = 0x12000, scoped, tag = 'internal scratch']
  #allocation2 [shape = 'f32[8,128]{1,0:T(8,128)}', space=vmem, size = 0x1000, scoped, tag = 'scratch operand']
  #allocation3 [shape = 'f32[1]{0:T(128)S(6)}', space=smem, size = 0x200, scoped, tag = 'scoped memory for tpu_custom_call.1']
  %s0 = inlined_call_operand.hbm [shape: f32[2,3,8,128], index: 0, kind: input, shape index: {}]
  %s1 = inlined_call_operand.vmem [shape: f32[3], index: 1, kind: input, shape index: {}]
  %s2 = inlined_call_operand.<no memory space> [shape: f32[1], index: 2, kind: input, shape index: {}]
  %s3 = inlined_call_operand.hbm [shape: f32[2,1,256,128], index: 3, kind: output, shape index: {}]
  %s4 = sld [smem:[#allocation0]]
  $region57: #{tpu_custom_call.1} parent=0
    _
  %s6 = ssub.s32 1, %s4
  %s7 = scalar_select 0, %s6, %s4
  %8 = sst [smem:[#allocation3]] %s2
  $region1: #{tpu_custom_call.1} parent=0
    #allocation4 [shape = 'u8[24576]{0}', space=vmem, size = 0x6000, scoped, tag = 'input window, operand 0']
    #allocation5 [shape = 's32[2]{0}', space=sflag, size = 0x8, scoped, tag = 'scoped memory for tpu_custom_call.1']
    #allocation6 [shape = 's32[2]{0}', space=sflag, size = 0x8, scoped, tag = 'scoped memory for tpu_custom_call.1']
    #allocation7 [shape = 's32[2]{0}', space=sflag, size = 0x8, scoped, tag = 'scoped memory for tpu_custom_call.1']
    #allocation8 [shape = 'u8[512]{0}', space=smem, size = 0x200, scoped, tag = 'input window, operand 1, single buffered']
    #allocation9 [shape = 'u8[262144]{0}', space=vmem, size = 0x40000, scoped, tag = 'output window, operand 0']
    %9 = vsyncpa [#allocation5], 0
    %s10 = scalar_lea.sflag [#allocation5], 1
    %11 = vsyncpa %s10, 0
    %12 = vsyncpa [#allocation7], 0
    %13 = vsyncpa [#allocation6], 0
    %s14 = scalar_lea.sflag [#allocation6], 1
    %15 = vsyncpa %s14, 0
    loop: start=0, step=1, limit=4
    $region2: #{tpu_custom_call.1} parent=1 // loop_pre_header
      _
    $region3: #{tpu_custom_call.1} parent=1 // loop_header
      %s17 = sphi 0, %s21
      %p18 = scmp.ge.s32.totalorder %s17, 4
      %s24 = sphi 0, %s43
      %s25 = sphi 0, %s39
      %s26 = sphi 0, %s35
      %s27 = sphi 0, %s24
      %s28 = sphi 0, %s25
      %s29 = sphi 0, %s26
      %s30 = sphi 0, %s27
      %s31 = sphi 0, %s28
      %s32 = sphi 0, %s29
      %s50 = sphi 0, %s52
      %s53 = sphi 0, %s50
      %s54 = sphi 0, %s53
      %s70 = sphi 0, %s54
      %s74 = sphi 0, %s74
      %s76 = sphi 0, %s74
      %s77 = sphi 0, %s76
      %s91 = sphi 0, %s77
      %s95 = sphi 0, %s95
      %s97 = sphi 0, %s95
      %s98 = sphi 0, %s97
      %s112 = sphi 0, %s98
      %s120 = sphi 0, %s122
      %s123 = sphi 0, %s120
      %s124 = sphi 0, %s123
      %s140 = sphi 0, %s124
    $region4: #{tpu_custom_call.1} parent=1 // loop_header_branch
      %20 = sbr.rel (%p18) target = $region8
    $region5: #{tpu_custom_call.1} parent=1 // loop_body
      %s22 = ssub.s32 %s17, 1
      %s23 = ssub.s32 %s17, 2
      %s33 = sadd.s32 1, %s26
      %p34 = scmp.ge.s32.totalorder %s33, 1
      %s35 = scalar_select %p34, 0, %s33
      %s36 = sadd.s32 1, %s25
      %s37 = scalar_select %p34, %s36, %s25
      %p38 = scmp.ge.s32.totalorder %s37, 1
      %s39 = scalar_select %p38, 0, %s37
      %s40 = sadd.s32 1, %s24
      %s41 = scalar_select %p38, %s40, %s24
      %p42 = scmp.ge.s32.totalorder %s41, 2
      %s43 = scalar_select %p42, 0, %s41
      %s44 = sadd.s32 %s25, %s26
      %s45 = sadd.s32 %s39, %s35
      %s46 = ssub.s32 %s24, %s43
      %s47 = ssub.s32 %s44, %s45
      %s48 = sor.u32 %s46, %s47
      %p49 = scmp.eq.s32.totalorder %s48, 0
      %s51 = sadd.s32 %s50, 1
      %s52 = scalar_select %p49, %s50, %s51
      %p55 = pneg %p49
      %p56 = scmp.eq.s32.totalorder %s17, 1
      %p57 = por %p55, %p56
      %p58 = scmp.ne.s32.totalorder %s50, %s53
      %p59 = scmp.eq.s32.totalorder %s17, 0
      %p60 = por %p58, %p59
      %p61 = scmp.ne.s32.totalorder %s50, %s53
      %p62 = scmp.eq.s32.totalorder %s22, 1
      %p63 = por %p61, %p62
      %p64 = scmp.ne.s32.totalorder %s53, %s54
      %p65 = scmp.eq.s32.totalorder %s22, 0
      %p66 = por %p64, %p65
      %p67 = scmp.ne.s32.totalorder %s53, %s54
      %p68 = scmp.eq.s32.totalorder %s23, 1
      %p69 = por %p67, %p68
      %p71 = scmp.ne.s32.totalorder %s54, %s70
      %p72 = scmp.eq.s32.totalorder %s23, 0
      %p73 = por %p71, %p72
      %s75 = sadd.s32 %s74, 1
      %p78 = scmp.eq.s32.totalorder %s17, 1
      %p79 = scmp.ne.s32.totalorder %s74, %s76
      %p80 = scmp.eq.s32.totalorder %s17, 0
      %p81 = por %p79, %p80
      %p82 = scmp.ne.s32.totalorder %s74, %s76
      %p83 = scmp.eq.s32.totalorder %s22, 1
      %p84 = por %p82, %p83
      %p85 = scmp.ne.s32.totalorder %s76, %s77
      %p86 = scmp.eq.s32.totalorder %s22, 0
      %p87 = por %p85, %p86
      %p88 = scmp.ne.s32.totalorder %s76, %s77
      %p89 = scmp.eq.s32.totalorder %s23, 1
      %p90 = por %p88, %p89
      %p92 = scmp.ne.s32.totalorder %s77, %s91
      %p93 = scmp.eq.s32.totalorder %s23, 0
      %p94 = por %p92, %p93
      %s96 = sadd.s32 %s95, 1
      %p99 = scmp.eq.s32.totalorder %s17, 1
      %p100 = scmp.ne.s32.totalorder %s95, %s97
      %p101 = scmp.eq.s32.totalorder %s17, 0
      %p102 = por %p100, %p101
      %p103 = scmp.ne.s32.totalorder %s95, %s97
      %p104 = scmp.eq.s32.totalorder %s22, 1
      %p105 = por %p103, %p104
      %p106 = scmp.ne.s32.totalorder %s97, %s98
      %p107 = scmp.eq.s32.totalorder %s22, 0
      %p108 = por %p106, %p107
      %p109 = scmp.ne.s32.totalorder %s97, %s98
      %p110 = scmp.eq.s32.totalorder %s23, 1
      %p111 = por %p109, %p110
      %p113 = scmp.ne.s32.totalorder %s98, %s112
      %p114 = scmp.eq.s32.totalorder %s23, 0
      %p115 = por %p113, %p114
      %s116 = ssub.s32 %s24, %s43
      %s117 = ssub.s32 %s25, %s39
      %s118 = sor.u32 %s116, %s117
      %p119 = scmp.eq.s32.totalorder %s118, 0
      %s121 = sadd.s32 %s120, 1
      %s122 = scalar_select %p119, %s120, %s121
      %p125 = pneg %p119
      %p126 = scmp.eq.s32.totalorder %s17, 1
      %p127 = por %p125, %p126
      %p128 = scmp.ne.s32.totalorder %s120, %s123
      %p129 = scmp.eq.s32.totalorder %s17, 0
      %p130 = por %p128, %p129
      %p131 = scmp.ne.s32.totalorder %s120, %s123
      %p132 = scmp.eq.s32.totalorder %s22, 1
      %p133 = por %p131, %p132
      %p134 = scmp.ne.s32.totalorder %s123, %s124
      %p135 = scmp.eq.s32.totalorder %s22, 0
      %p136 = por %p134, %p135
      %p137 = scmp.ne.s32.totalorder %s123, %s124
      %p138 = scmp.eq.s32.totalorder %s23, 1
      %p139 = por %p137, %p138
      %p141 = scmp.ne.s32.totalorder %s124, %s140
      %p142 = scmp.eq.s32.totalorder %s23, 0
      %p143 = por %p141, %p142
      %p144 = scmp.le.s32.totalorder 1, %s17
      %p145 = scmp.lt.s32.totalorder %s17, 3
      %p146 = pnand %p144, %p145
      %p147 = pneg %p146
      // Predicated region
      $region9: #{tpu_custom_call.1} parent=5 // pred_check
        _
      $region10: #{tpu_custom_call.1} parent=5 // pred_check_branch
        %149 = sbr.rel (%p146) target = $region12
      $region11: #{tpu_custom_call.1} parent=5 // pred_region
        %s150 = ssub.s32 %s17, 1
        // Predicated region
        $region13: #{tpu_custom_call.1} parent=11 // pred_check
          %p151 = pneg %p87
        $region14: #{tpu_custom_call.1} parent=11 // pred_check_branch
          %153 = sbr.rel (%p151) target = $region16
        $region15: #{tpu_custom_call.1} parent=11 // pred_region
          %s155 = ssub.s32 16, 16
          %156 = vsyncadd [#allocation7], %s155
          %s158 = sshll.u32 %s1, 4
          %s159 = int_to_ptr.vmem [resolvable:$true] %s158
          %161 = dma.vmem_to_smem %s159, 16, [#allocation8], [#allocation7]
        $region16: #{tpu_custom_call.1} parent=11 // pred_fallthru
          _
        // Predicated region
        $region17: #{tpu_custom_call.1} parent=11 // pred_check
          %p162 = pneg %p108
        $region18: #{tpu_custom_call.1} parent=11 // pred_check_branch
          %164 = sbr.rel (%p162) target = $region20
        $region19: #{tpu_custom_call.1} parent=11 // pred_region
          _
        $region20: #{tpu_custom_call.1} parent=11 // pred_fallthru
          _
      $region12: #{tpu_custom_call.1} parent=5 // pred_fallthru
        _
      %p165 = scmp.lt.s32.totalorder %s17, 2
      // Predicated region
      $region21: #{tpu_custom_call.1} parent=5 // pred_check
        %p166 = pneg %p165
      $region22: #{tpu_custom_call.1} parent=5 // pred_check_branch
        %168 = sbr.rel (%p166) target = $region24
      $region23: #{tpu_custom_call.1} parent=5 // pred_region
        // Predicated region
        $region25: #{tpu_custom_call.1} parent=23 // pred_check
          %p169 = pneg %p60
        $region26: #{tpu_custom_call.1} parent=23 // pred_check_branch
          %171 = sbr.rel (%p169) target = $region28
        $region27: #{tpu_custom_call.1} parent=23 // pred_region
          %s172 = sand.u32 %s50, 1
          %s173 = scalar_lea.sflag [#allocation5], %s172
          %s174 = sand.u32 %s50, 1
          %s175 = smul.addr %s174, 24
          %s176 = scalar_lea.vmem [#allocation4], %s175
          %s177 = sadd.s32 %s25, %s26
          %s179 = ssub.s32 384, 384
          %180 = vsyncadd %s173, %s179
          %s181 = smul.addr %s24, 3
          %s182 = sadd.s32 %s177, %s181
          %s183 = smul.addr %s182, 128
          %s184 = scalar_lea.hbm %s0, %s183
          %s185 = sshll.u32 %s176, 4
          %s186 = int_to_ptr.vmem [resolvable:$true] %s185
          %191 = dma.hbm_to_vmem [thread:$0]  %s184, 384, %s186, %s173, 128, 128, 8
        $region28: #{tpu_custom_call.1} parent=23 // pred_fallthru
          _
      $region24: #{tpu_custom_call.1} parent=5 // pred_fallthru
        _
      %p192 = scmp.le.s32.totalorder 1, %s17
      %p193 = scmp.lt.s32.totalorder %s17, 3
      %p194 = pnand %p192, %p193
      %p195 = pneg %p194
      // Predicated region
      $region29: #{tpu_custom_call.1} parent=5 // pred_check
        _
      $region30: #{tpu_custom_call.1} parent=5 // pred_check_branch
        %197 = sbr.rel (%p194) target = $region32
      $region31: #{tpu_custom_call.1} parent=5 // pred_region
        %s198 = ssub.s32 %s17, 1
        %s199 = sand.u32 %s53, 1
        %s200 = scalar_lea.sflag [#allocation5], %s199
        %s201 = sand.u32 %s53, 1
        %s202 = smul.addr %s201, 24
        %s203 = scalar_lea.vmem [#allocation4], %s202
        // Predicated region
        $region33: #{tpu_custom_call.1} parent=31 // pred_check
          %p204 = pneg %p66
        $region34: #{tpu_custom_call.1} parent=31 // pred_check_branch
          %206 = sbr.rel (%p204) target = $region36
        $region35: #{tpu_custom_call.1} parent=31 // pred_region
          %207 = dma.done %s200, 384
        $region36: #{tpu_custom_call.1} parent=31 // pred_fallthru
          _
        // Predicated region
        $region37: #{tpu_custom_call.1} parent=31 // pred_check
          %p208 = pneg %p87
        $region38: #{tpu_custom_call.1} parent=31 // pred_check_branch
          %210 = sbr.rel (%p208) target = $region40
        $region39: #{tpu_custom_call.1} parent=31 // pred_region
          %211 = dma.done [#allocation7], 16
        $region40: #{tpu_custom_call.1} parent=31 // pred_fallthru
          _
        %212 = sfence
        %s213 = sand.u32 %s53, 1
        %s214 = scalar_lea.sflag [#allocation5], %s213
        %s215 = sand.u32 %s53, 1
        %s216 = smul.addr %s215, 24
        %s217 = scalar_lea.vmem [#allocation4], %s216
        %p218 = pneg %p66
        %p219 = pneg %p63
        %p220 = pneg %p87
        %p221 = pneg %p84
        %p222 = pneg %p108
        %p223 = pneg %p105
        %p224 = pneg %p136
        %p225 = pneg %p133
        %s226 = sand.u32 %s123, 1
        %s227 = scalar_lea.sflag [#allocation6], %s226
        %s228 = sand.u32 %s123, 1
        %s229 = smul.addr %s228, 256
        %s230 = scalar_lea.vmem [#allocation9], %s229
        %s231 = sadd.s32 %s28, %s29
        %v232 = vld [vmem:[%s203] sm:$0xff]
        %s233 = sld [smem:[#allocation8]]
        %v234 = vstv %s233
        %v235 = vmul.f32 %v232, %v234
        %s236 = scalar_lea.vmem %s203, 8 [#allocation4]
        %v237 = vld [vmem:[%s236] sm:$0xff]
        %s238 = sld [smem:[#allocation8 + $0x1]]
        %v239 = vstv %s238
        %v240 = vmul.f32 %v237, %v239
        %v241 = vadd.f32 %v235, %v240
        %s242 = scalar_lea.vmem %s203, 16 [#allocation4]
        %v243 = vld [vmem:[%s242] sm:$0xff]
        %s244 = sld [smem:[#allocation8 + $0x2]]
        %v245 = vstv %s244
        %v246 = vmul.f32 %v243, %v245
        %v247 = vadd.f32 %v241, %v246
        %s248 = sld [smem:[#allocation3]]
        %v249 = vstv %s248
        %v250 = vadd.f32 %v247, %v249
        %v251 = vsub.f32 0.0, %v250
        %v252 = vmul.f32 %v251, 1.442695
        %v253 = vpow.pop %v252
        %v254 = vadd.f32 %v253, 1.0
        %v255 = vrcp.pop %v254
        %v256 = vmul.f32 1.0, %v255
        %257 = vst [vmem:[#allocation2] sm:$0xff] %v256
        %v258 = vlaneseq
        %v259 = vshrl.u32 %v258, 7
        %v260 = vadd.s32 %v259, 8
        %v261 = vadd.s32 %v259, 16
        %v262 = vadd.s32 %v259, 24
        %v263 = vadd.s32 %v259, 32
        %v264 = vadd.s32 %v259, 40
        %v265 = vadd.s32 %v259, 48
        %v266 = vadd.s32 %v259, 56
        %v267 = vadd.s32 %v259, 64
        %v268 = vadd.s32 %v259, 72
        %v269 = vadd.s32 %v259, 80
        %v270 = vadd.s32 %v259, 88
        %v271 = vadd.s32 %v259, 96
        %v272 = vadd.s32 %v259, 104
        %v273 = vadd.s32 %v259, 112
        %v274 = vadd.s32 %v259, 120
        %v275 = vadd.s32 %v259, 128
        %v276 = vadd.s32 %v259, 136
        %v277 = vadd.s32 %v259, 144
        %v278 = vadd.s32 %v259, 152
        %v279 = vadd.s32 %v259, 160
        %v280 = vadd.s32 %v259, 168
        %v281 = vadd.s32 %v259, 176
        %v282 = vadd.s32 %v259, 184
        %v283 = vadd.s32 %v259, 192
        %v284 = vadd.s32 %v259, 200
        %v285 = vadd.s32 %v259, 208
        %v286 = vadd.s32 %v259, 216
        %v287 = vadd.s32 %v259, 224
        %v288 = vadd.s32 %v259, 232
        %v289 = vadd.s32 %v259, 240
        %v290 = vadd.s32 %v259, 248
        %v291 = vld [vmem:[#allocation2] sm:$0x1]
        %v292 = vmul.f32 %v291, 256.0
        %v293 = vfloor.f32 %v292
        %v294 = vcvt.f32.s32.to.zero.pseudo %v293
        %vm295 = vcmp.lt.s32.totalorder %v294, 255
        %v296 = vsel %vm295, %v294, 255
        %v297 = vlaneseq
        %v298 = vshrl.u32 %v297, 7
        %v299 = vsub.s32 0, %v298
        %v300 = vrot.slane %v296, %v299
        %vm301 = vcmp.eq.s32.totalorder %v259, %v300
        %vm302 = vcmp.eq.s32.totalorder %v260, %v300
        %vm303 = vcmp.eq.s32.totalorder %v261, %v300
        %vm304 = vcmp.eq.s32.totalorder %v262, %v300
        %vm305 = vcmp.eq.s32.totalorder %v263, %v300
        %vm306 = vcmp.eq.s32.totalorder %v264, %v300
        %vm307 = vcmp.eq.s32.totalorder %v265, %v300
        %vm308 = vcmp.eq.s32.totalorder %v266, %v300
        %vm309 = vcmp.eq.s32.totalorder %v267, %v300
        %vm310 = vcmp.eq.s32.totalorder %v268, %v300
        %vm311 = vcmp.eq.s32.totalorder %v269, %v300
        %vm312 = vcmp.eq.s32.totalorder %v270, %v300
        %vm313 = vcmp.eq.s32.totalorder %v271, %v300
        %vm314 = vcmp.eq.s32.totalorder %v272, %v300
        %vm315 = vcmp.eq.s32.totalorder %v273, %v300
        %vm316 = vcmp.eq.s32.totalorder %v274, %v300
        %vm317 = vcmp.eq.s32.totalorder %v275, %v300
        %vm318 = vcmp.eq.s32.totalorder %v276, %v300
        %vm319 = vcmp.eq.s32.totalorder %v277, %v300
        %vm320 = vcmp.eq.s32.totalorder %v278, %v300
        %vm321 = vcmp.eq.s32.totalorder %v279, %v300
        %vm322 = vcmp.eq.s32.totalorder %v280, %v300
        %vm323 = vcmp.eq.s32.totalorder %v281, %v300
        %vm324 = vcmp.eq.s32.totalorder %v282, %v300
        %vm325 = vcmp.eq.s32.totalorder %v283, %v300
        %vm326 = vcmp.eq.s32.totalorder %v284, %v300
        %vm327 = vcmp.eq.s32.totalorder %v285, %v300
        %vm328 = vcmp.eq.s32.totalorder %v286, %v300
        %vm329 = vcmp.eq.s32.totalorder %v287, %v300
        %vm330 = vcmp.eq.s32.totalorder %v288, %v300
        %vm331 = vcmp.eq.s32.totalorder %v289, %v300
        %vm332 = vcmp.eq.s32.totalorder %v290, %v300
        %v333 = vsel %vm301, 1, 0
        %v334 = vsel %vm302, 1, 0
        %v335 = vsel %vm303, 1, 0
        %v336 = vsel %vm304, 1, 0
        %v337 = vsel %vm305, 1, 0
        %v338 = vsel %vm306, 1, 0
        %v339 = vsel %vm307, 1, 0
        %v340 = vsel %vm308, 1, 0
        %v341 = vsel %vm309, 1, 0
        %v342 = vsel %vm310, 1, 0
        %v343 = vsel %vm311, 1, 0
        %v344 = vsel %vm312, 1, 0
        %v345 = vsel %vm313, 1, 0
        %v346 = vsel %vm314, 1, 0
        %v347 = vsel %vm315, 1, 0
        %v348 = vsel %vm316, 1, 0
        %v349 = vsel %vm317, 1, 0
        %v350 = vsel %vm318, 1, 0
        %v351 = vsel %vm319, 1, 0
        %v352 = vsel %vm320, 1, 0
        %v353 = vsel %vm321, 1, 0
        %v354 = vsel %vm322, 1, 0
        %v355 = vsel %vm323, 1, 0
        %v356 = vsel %vm324, 1, 0
        %v357 = vsel %vm325, 1, 0
        %v358 = vsel %vm326, 1, 0
        %v359 = vsel %vm327, 1, 0
        %v360 = vsel %vm328, 1, 0
        %v361 = vsel %vm329, 1, 0
        %v362 = vsel %vm330, 1, 0
        %v363 = vsel %vm331, 1, 0
        %v364 = vsel %vm332, 1, 0
        %v365 = vcvt.s32.f32 %v333
        %v366 = vcvt.s32.f32 %v334
        %v367 = vcvt.s32.f32 %v335
        %v368 = vcvt.s32.f32 %v336
        %v369 = vcvt.s32.f32 %v337
        %v370 = vcvt.s32.f32 %v338
        %v371 = vcvt.s32.f32 %v339
        %v372 = vcvt.s32.f32 %v340
        %v373 = vcvt.s32.f32 %v341
        %v374 = vcvt.s32.f32 %v342
        %v375 = vcvt.s32.f32 %v343
        %v376 = vcvt.s32.f32 %v344
        %v377 = vcvt.s32.f32 %v345
        %v378 = vcvt.s32.f32 %v346
        %v379 = vcvt.s32.f32 %v347
        %v380 = vcvt.s32.f32 %v348
        %v381 = vcvt.s32.f32 %v349
        %v382 = vcvt.s32.f32 %v350
        %v383 = vcvt.s32.f32 %v351
        %v384 = vcvt.s32.f32 %v352
        %v385 = vcvt.s32.f32 %v353
        %v386 = vcvt.s32.f32 %v354
        %v387 = vcvt.s32.f32 %v355
        %v388 = vcvt.s32.f32 %v356
        %v389 = vcvt.s32.f32 %v357
        %v390 = vcvt.s32.f32 %v358
        %v391 = vcvt.s32.f32 %v359
        %v392 = vcvt.s32.f32 %v360
        %v393 = vcvt.s32.f32 %v361
        %v394 = vcvt.s32.f32 %v362
        %v395 = vcvt.s32.f32 %v363
        %v396 = vcvt.s32.f32 %v364
        %v397 = vadd.f32 %v365, 0.0
        %v398 = vadd.f32 %v366, 0.0
        %v399 = vadd.f32 %v367, 0.0
        %v400 = vadd.f32 %v368, 0.0
        %v401 = vadd.f32 %v369, 0.0
        %v402 = vadd.f32 %v370, 0.0
        %v403 = vadd.f32 %v371, 0.0
        %v404 = vadd.f32 %v372, 0.0
        %v405 = vadd.f32 %v373, 0.0
        %v406 = vadd.f32 %v374, 0.0
        %v407 = vadd.f32 %v375, 0.0
        %v408 = vadd.f32 %v376, 0.0
        %v409 = vadd.f32 %v377, 0.0
        %v410 = vadd.f32 %v378, 0.0
        %v411 = vadd.f32 %v379, 0.0
        %v412 = vadd.f32 %v380, 0.0
        %v413 = vadd.f32 %v381, 0.0
        %v414 = vadd.f32 %v382, 0.0
        %v415 = vadd.f32 %v383, 0.0
        %v416 = vadd.f32 %v384, 0.0
        %v417 = vadd.f32 %v385, 0.0
        %v418 = vadd.f32 %v386, 0.0
        %v419 = vadd.f32 %v387, 0.0
        %v420 = vadd.f32 %v388, 0.0
        %v421 = vadd.f32 %v389, 0.0
        %v422 = vadd.f32 %v390, 0.0
        %v423 = vadd.f32 %v391, 0.0
        %v424 = vadd.f32 %v392, 0.0
        %v425 = vadd.f32 %v393, 0.0
        %v426 = vadd.f32 %v394, 0.0
        %v427 = vadd.f32 %v395, 0.0
        %v428 = vadd.f32 %v396, 0.0
        %v429 = vld [vmem:[#allocation2 + $0x1] sm:$0x1]
        %v430 = vmul.f32 %v429, 256.0
        %v431 = vfloor.f32 %v430
        %v432 = vcvt.f32.s32.to.zero.pseudo %v431
        %vm433 = vcmp.lt.s32.totalorder %v432, 255
        %v434 = vsel %vm433, %v432, 255
        %v435 = vlaneseq
        %v436 = vshrl.u32 %v435, 7
        %v437 = vsub.s32 0, %v436
        %v438 = vrot.slane %v434, %v437
        %vm439 = vcmp.eq.s32.totalorder %v259, %v438
        %vm440 = vcmp.eq.s32.totalorder %v260, %v438
        %vm441 = vcmp.eq.s32.totalorder %v261, %v438
        %vm442 = vcmp.eq.s32.totalorder %v262, %v438
        %vm443 = vcmp.eq.s32.totalorder %v263, %v438
        %vm444 = vcmp.eq.s32.totalorder %v264, %v438
        %vm445 = vcmp.eq.s32.totalorder %v265, %v438
        %vm446 = vcmp.eq.s32.totalorder %v266, %v438
        %vm447 = vcmp.eq.s32.totalorder %v267, %v438
        %vm448 = vcmp.eq.s32.totalorder %v268, %v438
        %vm449 = vcmp.eq.s32.totalorder %v269, %v438
        %vm450 = vcmp.eq.s32.totalorder %v270, %v438
        %vm451 = vcmp.eq.s32.totalorder %v271, %v438
        %vm452 = vcmp.eq.s32.totalorder %v272, %v438
        %vm453 = vcmp.eq.s32.totalorder %v273, %v438
        %vm454 = vcmp.eq.s32.totalorder %v274, %v438
        %vm455 = vcmp.eq.s32.totalorder %v275, %v438
        %vm456 = vcmp.eq.s32.totalorder %v276, %v438
        %vm457 = vcmp.eq.s32.totalorder %v277, %v438
        %vm458 = vcmp.eq.s32.totalorder %v278, %v438
        %vm459 = vcmp.eq.s32.totalorder %v279, %v438
        %vm460 = vcmp.eq.s32.totalorder %v280, %v438
        %vm461 = vcmp.eq.s32.totalorder %v281, %v438
        %vm462 = vcmp.eq.s32.totalorder %v282, %v438
        %vm463 = vcmp.eq.s32.totalorder %v283, %v438
        %vm464 = vcmp.eq.s32.totalorder %v284, %v438
        %vm465 = vcmp.eq.s32.totalorder %v285, %v438
        %vm466 = vcmp.eq.s32.totalorder %v286, %v438
        %vm467 = vcmp.eq.s32.totalorder %v287, %v438
        %vm468 = vcmp.eq.s32.totalorder %v288, %v438
        %vm469 = vcmp.eq.s32.totalorder %v289, %v438
        %vm470 = vcmp.eq.s32.totalorder %v290, %v438
        %v471 = vsel %vm439, 1, 0
        %v472 = vsel %vm440, 1, 0
        %v473 = vsel %vm441, 1, 0
        %v474 = vsel %vm442, 1, 0
        %v475 = vsel %vm443, 1, 0
        %v476 = vsel %vm444, 1, 0
        %v477 = vsel %vm445, 1, 0
        %v478 = vsel %vm446, 1, 0
        %v479 = vsel %vm447, 1, 0
        %v480 = vsel %vm448, 1, 0
        %v481 = vsel %vm449, 1, 0
        %v482 = vsel %vm450, 1, 0
        %v483 = vsel %vm451, 1, 0
        %v484 = vsel %vm452, 1, 0
        %v485 = vsel %vm453, 1, 0
        %v486 = vsel %vm454, 1, 0
        %v487 = vsel %vm455, 1, 0
        %v488 = vsel %vm456, 1, 0
        %v489 = vsel %vm457, 1, 0
        %v490 = vsel %vm458, 1, 0
        %v491 = vsel %vm459, 1, 0
        %v492 = vsel %vm460, 1, 0
        %v493 = vsel %vm461, 1, 0
        %v494 = vsel %vm462, 1, 0
        %v495 = vsel %vm463, 1, 0
        %v496 = vsel %vm464, 1, 0
        %v497 = vsel %vm465, 1, 0
        %v498 = vsel %vm466, 1, 0
        %v499 = vsel %vm467, 1, 0
        %v500 = vsel %vm468, 1, 0
        %v501 = vsel %vm469, 1, 0
        %v502 = vsel %vm470, 1, 0
        %v503 = vcvt.s32.f32 %v471
        %v504 = vcvt.s32.f32 %v472
        %v505 = vcvt.s32.f32 %v473
        %v506 = vcvt.s32.f32 %v474
        %v507 = vcvt.s32.f32 %v475
        %v508 = vcvt.s32.f32 %v476
        %v509 = vcvt.s32.f32 %v477
        %v510 = vcvt.s32.f32 %v478
        %v511 = vcvt.s32.f32 %v479
        %v512 = vcvt.s32.f32 %v480
        %v513 = vcvt.s32.f32 %v481
        %v514 = vcvt.s32.f32 %v482
        %v515 = vcvt.s32.f32 %v483
        %v516 = vcvt.s32.f32 %v484
        %v517 = vcvt.s32.f32 %v485
        %v518 = vcvt.s32.f32 %v486
        %v519 = vcvt.s32.f32 %v487
        %v520 = vcvt.s32.f32 %v488
        %v521 = vcvt.s32.f32 %v489
        %v522 = vcvt.s32.f32 %v490
        %v523 = vcvt.s32.f32 %v491
        %v524 = vcvt.s32.f32 %v492
        %v525 = vcvt.s32.f32 %v493
        %v526 = vcvt.s32.f32 %v494
        %v527 = vcvt.s32.f32 %v495
        %v528 = vcvt.s32.f32 %v496
        %v529 = vcvt.s32.f32 %v497
        %v530 = vcvt.s32.f32 %v498
        %v531 = vcvt.s32.f32 %v499
        %v532 = vcvt.s32.f32 %v500
        %v533 = vcvt.s32.f32 %v501
        %v534 = vcvt.s32.f32 %v502
        %v535 = vadd.f32 %v397, %v503
        %v536 = vadd.f32 %v398, %v504
        %v537 = vadd.f32 %v399, %v505
        %v538 = vadd.f32 %v400, %v506
        %v539 = vadd.f32 %v401, %v507
        %v540 = vadd.f32 %v402, %v508
        %v541 = vadd.f32 %v403, %v509
        %v542 = vadd.f32 %v404, %v510
        %v543 = vadd.f32 %v405, %v511
        %v544 = vadd.f32 %v406, %v512
        %v545 = vadd.f32 %v407, %v513
        %v546 = vadd.f32 %v408, %v514
        %v547 = vadd.f32 %v409, %v515
        %v548 = vadd.f32 %v410, %v516
        %v549 = vadd.f32 %v411, %v517
        %v550 = vadd.f32 %v412, %v518
        %v551 = vadd.f32 %v413, %v519
        %v552 = vadd.f32 %v414, %v520
        %v553 = vadd.f32 %v415, %v521
        %v554 = vadd.f32 %v416, %v522
        %v555 = vadd.f32 %v417, %v523
        %v556 = vadd.f32 %v418, %v524
        %v557 = vadd.f32 %v419, %v525
        %v558 = vadd.f32 %v420, %v526
        %v559 = vadd.f32 %v421, %v527
        %v560 = vadd.f32 %v422, %v528
        %v561 = vadd.f32 %v423, %v529
        %v562 = vadd.f32 %v424, %v530
        %v563 = vadd.f32 %v425, %v531
        %v564 = vadd.f32 %v426, %v532
        %v565 = vadd.f32 %v427, %v533
        %v566 = vadd.f32 %v428, %v534
        %v567 = vld [vmem:[#allocation2 + $0x2] sm:$0x1]
        %v568 = vmul.f32 %v567, 256.0
        %v569 = vfloor.f32 %v568
        %v570 = vcvt.f32.s32.to.zero.pseudo %v569
        %vm571 = vcmp.lt.s32.totalorder %v570, 255
        %v572 = vsel %vm571, %v570, 255
        %v573 = vlaneseq
        %v574 = vshrl.u32 %v573, 7
        %v575 = vsub.s32 0, %v574
        %v576 = vrot.slane %v572, %v575
        %vm577 = vcmp.eq.s32.totalorder %v259, %v576
        %vm578 = vcmp.eq.s32.totalorder %v260, %v576
        %vm579 = vcmp.eq.s32.totalorder %v261, %v576
        %vm580 = vcmp.eq.s32.totalorder %v262, %v576
        %vm581 = vcmp.eq.s32.totalorder %v263, %v576
        %vm582 = vcmp.eq.s32.totalorder %v264, %v576
        %vm583 = vcmp.eq.s32.totalorder %v265, %v576
        %vm584 = vcmp.eq.s32.totalorder %v266, %v576
        %vm585 = vcmp.eq.s32.totalorder %v267, %v576
        %vm586 = vcmp.eq.s32.totalorder %v268, %v576
        %vm587 = vcmp.eq.s32.totalorder %v269, %v576
        %vm588 = vcmp.eq.s32.totalorder %v270, %v576
        %vm589 = vcmp.eq.s32.totalorder %v271, %v576
        %vm590 = vcmp.eq.s32.totalorder %v272, %v576
        %vm591 = vcmp.eq.s32.totalorder %v273, %v576
        %vm592 = vcmp.eq.s32.totalorder %v274, %v576
        %vm593 = vcmp.eq.s32.totalorder %v275, %v576
        %vm594 = vcmp.eq.s32.totalorder %v276, %v576
        %vm595 = vcmp.eq.s32.totalorder %v277, %v576
        %vm596 = vcmp.eq.s32.totalorder %v278, %v576
        %vm597 = vcmp.eq.s32.totalorder %v279, %v576
        %vm598 = vcmp.eq.s32.totalorder %v280, %v576
        %vm599 = vcmp.eq.s32.totalorder %v281, %v576
        %vm600 = vcmp.eq.s32.totalorder %v282, %v576
        %vm601 = vcmp.eq.s32.totalorder %v283, %v576
        %vm602 = vcmp.eq.s32.totalorder %v284, %v576
        %vm603 = vcmp.eq.s32.totalorder %v285, %v576
        %vm604 = vcmp.eq.s32.totalorder %v286, %v576
        %vm605 = vcmp.eq.s32.totalorder %v287, %v576
        %vm606 = vcmp.eq.s32.totalorder %v288, %v576
        %vm607 = vcmp.eq.s32.totalorder %v289, %v576
        %vm608 = vcmp.eq.s32.totalorder %v290, %v576
        %v609 = vsel %vm577, 1, 0
        %v610 = vsel %vm578, 1, 0
        %v611 = vsel %vm579, 1, 0
        %v612 = vsel %vm580, 1, 0
        %v613 = vsel %vm581, 1, 0
        %v614 = vsel %vm582, 1, 0
        %v615 = vsel %vm583, 1, 0
        %v616 = vsel %vm584, 1, 0
        %v617 = vsel %vm585, 1, 0
        %v618 = vsel %vm586, 1, 0
        %v619 = vsel %vm587, 1, 0
        %v620 = vsel %vm588, 1, 0
        %v621 = vsel %vm589, 1, 0
        %v622 = vsel %vm590, 1, 0
        %v623 = vsel %vm591, 1, 0
        %v624 = vsel %vm592, 1, 0
        %v625 = vsel %vm593, 1, 0
        %v626 = vsel %vm594, 1, 0
        %v627 = vsel %vm595, 1, 0
        %v628 = vsel %vm596, 1, 0
        %v629 = vsel %vm597, 1, 0
        %v630 = vsel %vm598, 1, 0
        %v631 = vsel %vm599, 1, 0
        %v632 = vsel %vm600, 1, 0
        %v633 = vsel %vm601, 1, 0
        %v634 = vsel %vm602, 1, 0
        %v635 = vsel %vm603, 1, 0
        %v636 = vsel %vm604, 1, 0
        %v637 = vsel %vm605, 1, 0
        %v638 = vsel %vm606, 1, 0
        %v639 = vsel %vm607, 1, 0
        %v640 = vsel %vm608, 1, 0
        %v641 = vcvt.s32.f32 %v609
        %v642 = vcvt.s32.f32 %v610
        %v643 = vcvt.s32.f32 %v611
        %v644 = vcvt.s32.f32 %v612
        %v645 = vcvt.s32.f32 %v613
        %v646 = vcvt.s32.f32 %v614
        %v647 = vcvt.s32.f32 %v615
        %v648 = vcvt.s32.f32 %v616
        %v649 = vcvt.s32.f32 %v617
        %v650 = vcvt.s32.f32 %v618
        %v651 = vcvt.s32.f32 %v619
        %v652 = vcvt.s32.f32 %v620
        %v653 = vcvt.s32.f32 %v621
        %v654 = vcvt.s32.f32 %v622
        %v655 = vcvt.s32.f32 %v623
        %v656 = vcvt.s32.f32 %v624
        %v657 = vcvt.s32.f32 %v625
        %v658 = vcvt.s32.f32 %v626
        %v659 = vcvt.s32.f32 %v627
        %v660 = vcvt.s32.f32 %v628
        %v661 = vcvt.s32.f32 %v629
        %v662 = vcvt.s32.f32 %v630
        %v663 = vcvt.s32.f32 %v631
        %v664 = vcvt.s32.f32 %v632
        %v665 = vcvt.s32.f32 %v633
        %v666 = vcvt.s32.f32 %v634
        %v667 = vcvt.s32.f32 %v635
        %v668 = vcvt.s32.f32 %v636
        %v669 = vcvt.s32.f32 %v637
        %v670 = vcvt.s32.f32 %v638
        %v671 = vcvt.s32.f32 %v639
        %v672 = vcvt.s32.f32 %v640
        %v673 = vadd.f32 %v535, %v641
        %v674 = vadd.f32 %v536, %v642
        %v675 = vadd.f32 %v537, %v643
        %v676 = vadd.f32 %v538, %v644
        %v677 = vadd.f32 %v539, %v645
        %v678 = vadd.f32 %v540, %v646
        %v679 = vadd.f32 %v541, %v647
        %v680 = vadd.f32 %v542, %v648
        %v681 = vadd.f32 %v543, %v649
        %v682 = vadd.f32 %v544, %v650
        %v683 = vadd.f32 %v545, %v651
        %v684 = vadd.f32 %v546, %v652
        %v685 = vadd.f32 %v547, %v653
        %v686 = vadd.f32 %v548, %v654
        %v687 = vadd.f32 %v549, %v655
        %v688 = vadd.f32 %v550, %v656
        %v689 = vadd.f32 %v551, %v657
        %v690 = vadd.f32 %v552, %v658
        %v691 = vadd.f32 %v553, %v659
        %v692 = vadd.f32 %v554, %v660
        %v693 = vadd.f32 %v555, %v661
        %v694 = vadd.f32 %v556, %v662
        %v695 = vadd.f32 %v557, %v663
        %v696 = vadd.f32 %v558, %v664
        %v697 = vadd.f32 %v559, %v665
        %v698 = vadd.f32 %v560, %v666
        %v699 = vadd.f32 %v561, %v667
        %v700 = vadd.f32 %v562, %v668
        %v701 = vadd.f32 %v563, %v669
        %v702 = vadd.f32 %v564, %v670
        %v703 = vadd.f32 %v565, %v671
        %v704 = vadd.f32 %v566, %v672
        %v705 = vld [vmem:[#allocation2 + $0x3] sm:$0x1]
        %v706 = vmul.f32 %v705, 256.0
        %v707 = vfloor.f32 %v706
        %v708 = vcvt.f32.s32.to.zero.pseudo %v707
        %vm709 = vcmp.lt.s32.totalorder %v708, 255
        %v710 = vsel %vm709, %v708, 255
        %v711 = vlaneseq
        %v712 = vshrl.u32 %v711, 7
        %v713 = vsub.s32 0, %v712
        %v714 = vrot.slane %v710, %v713
        %vm715 = vcmp.eq.s32.totalorder %v259, %v714
        %vm716 = vcmp.eq.s32.totalorder %v260, %v714
        %vm717 = vcmp.eq.s32.totalorder %v261, %v714
        %vm718 = vcmp.eq.s32.totalorder %v262, %v714
        %vm719 = vcmp.eq.s32.totalorder %v263, %v714
        %vm720 = vcmp.eq.s32.totalorder %v264, %v714
        %vm721 = vcmp.eq.s32.totalorder %v265, %v714
        %vm722 = vcmp.eq.s32.totalorder %v266, %v714
        %vm723 = vcmp.eq.s32.totalorder %v267, %v714
        %vm724 = vcmp.eq.s32.totalorder %v268, %v714
        %vm725 = vcmp.eq.s32.totalorder %v269, %v714
        %vm726 = vcmp.eq.s32.totalorder %v270, %v714
        %vm727 = vcmp.eq.s32.totalorder %v271, %v714
        %vm728 = vcmp.eq.s32.totalorder %v272, %v714
        %vm729 = vcmp.eq.s32.totalorder %v273, %v714
        %vm730 = vcmp.eq.s32.totalorder %v274, %v714
        %vm731 = vcmp.eq.s32.totalorder %v275, %v714
        %vm732 = vcmp.eq.s32.totalorder %v276, %v714
        %vm733 = vcmp.eq.s32.totalorder %v277, %v714
        %vm734 = vcmp.eq.s32.totalorder %v278, %v714
        %vm735 = vcmp.eq.s32.totalorder %v279, %v714
        %vm736 = vcmp.eq.s32.totalorder %v280, %v714
        %vm737 = vcmp.eq.s32.totalorder %v281, %v714
        %vm738 = vcmp.eq.s32.totalorder %v282, %v714
        %vm739 = vcmp.eq.s32.totalorder %v283, %v714
        %vm740 = vcmp.eq.s32.totalorder %v284, %v714
        %vm741 = vcmp.eq.s32.totalorder %v285, %v714
        %vm742 = vcmp.eq.s32.totalorder %v286, %v714
        %vm743 = vcmp.eq.s32.totalorder %v287, %v714
        %vm744 = vcmp.eq.s32.totalorder %v288, %v714
        %vm745 = vcmp.eq.s32.totalorder %v289, %v714
        %vm746 = vcmp.eq.s32.totalorder %v290, %v714
        %v747 = vsel %vm715, 1, 0
        %v748 = vsel %vm716, 1, 0
        %v749 = vsel %vm717, 1, 0
        %v750 = vsel %vm718, 1, 0
        %v751 = vsel %vm719, 1, 0
        %v752 = vsel %vm720, 1, 0
        %v753 = vsel %vm721, 1, 0
        %v754 = vsel %vm722, 1, 0
        %v755 = vsel %vm723, 1, 0
        %v756 = vsel %vm724, 1, 0
        %v757 = vsel %vm725, 1, 0
        %v758 = vsel %vm726, 1, 0
        %v759 = vsel %vm727, 1, 0
        %v760 = vsel %vm728, 1, 0
        %v761 = vsel %vm729, 1, 0
        %v762 = vsel %vm730, 1, 0
        %v763 = vsel %vm731, 1, 0
        %v764 = vsel %vm732, 1, 0
        %v765 = vsel %vm733, 1, 0
        %v766 = vsel %vm734, 1, 0
        %v767 = vsel %vm735, 1, 0
        %v768 = vsel %vm736, 1, 0
        %v769 = vsel %vm737, 1, 0
        %v770 = vsel %vm738, 1, 0
        %v771 = vsel %vm739, 1, 0
        %v772 = vsel %vm740, 1, 0
        %v773 = vsel %vm741, 1, 0
        %v774 = vsel %vm742, 1, 0
        %v775 = vsel %vm743, 1, 0
        %v776 = vsel %vm744, 1, 0
        %v777 = vsel %vm745, 1, 0
        %v778 = vsel %vm746, 1, 0
        %v779 = vcvt.s32.f32 %v747
        %v780 = vcvt.s32.f32 %v748
        %v781 = vcvt.s32.f32 %v749
        %v782 = vcvt.s32.f32 %v750
        %v783 = vcvt.s32.f32 %v751
        %v784 = vcvt.s32.f32 %v752
        %v785 = vcvt.s32.f32 %v753
        %v786 = vcvt.s32.f32 %v754
        %v787 = vcvt.s32.f32 %v755
        %v788 = vcvt.s32.f32 %v756
        %v789 = vcvt.s32.f32 %v757
        %v790 = vcvt.s32.f32 %v758
        %v791 = vcvt.s32.f32 %v759
        %v792 = vcvt.s32.f32 %v760
        %v793 = vcvt.s32.f32 %v761
        %v794 = vcvt.s32.f32 %v762
        %v795 = vcvt.s32.f32 %v763
        %v796 = vcvt.s32.f32 %v764
        %v797 = vcvt.s32.f32 %v765
        %v798 = vcvt.s32.f32 %v766
        %v799 = vcvt.s32.f32 %v767
        %v800 = vcvt.s32.f32 %v768
        %v801 = vcvt.s32.f32 %v769
        %v802 = vcvt.s32.f32 %v770
        %v803 = vcvt.s32.f32 %v771
        %v804 = vcvt.s32.f32 %v772
        %v805 = vcvt.s32.f32 %v773
        %v806 = vcvt.s32.f32 %v774
        %v807 = vcvt.s32.f32 %v775
        %v808 = vcvt.s32.f32 %v776
        %v809 = vcvt.s32.f32 %v777
        %v810 = vcvt.s32.f32 %v778
        %v811 = vadd.f32 %v673, %v779
        %v812 = vadd.f32 %v674, %v780
        %v813 = vadd.f32 %v675, %v781
        %v814 = vadd.f32 %v676, %v782
        %v815 = vadd.f32 %v677, %v783
        %v816 = vadd.f32 %v678, %v784
        %v817 = vadd.f32 %v679, %v785
        %v818 = vadd.f32 %v680, %v786
        %v819 = vadd.f32 %v681, %v787
        %v820 = vadd.f32 %v682, %v788
        %v821 = vadd.f32 %v683, %v789
        %v822 = vadd.f32 %v684, %v790
        %v823 = vadd.f32 %v685, %v791
        %v824 = vadd.f32 %v686, %v792
        %v825 = vadd.f32 %v687, %v793
        %v826 = vadd.f32 %v688, %v794
        %v827 = vadd.f32 %v689, %v795
        %v828 = vadd.f32 %v690, %v796
        %v829 = vadd.f32 %v691, %v797
        %v830 = vadd.f32 %v692, %v798
        %v831 = vadd.f32 %v693, %v799
        %v832 = vadd.f32 %v694, %v800
        %v833 = vadd.f32 %v695, %v801
        %v834 = vadd.f32 %v696, %v802
        %v835 = vadd.f32 %v697, %v803
        %v836 = vadd.f32 %v698, %v804
        %v837 = vadd.f32 %v699, %v805
        %v838 = vadd.f32 %v700, %v806
        %v839 = vadd.f32 %v701, %v807
        %v840 = vadd.f32 %v702, %v808
        %v841 = vadd.f32 %v703, %v809
        %v842 = vadd.f32 %v704, %v810
        %v843 = vld [vmem:[#allocation2 + $0x4] sm:$0x1]
        %v844 = vmul.f32 %v843, 256.0
        %v845 = vfloor.f32 %v844
        %v846 = vcvt.f32.s32.to.zero.pseudo %v845
        %vm847 = vcmp.lt.s32.totalorder %v846, 255
        %v848 = vsel %vm847, %v846, 255
        %v849 = vlaneseq
        %v850 = vshrl.u32 %v849, 7
        %v851 = vsub.s32 0, %v850
        %v852 = vrot.slane %v848, %v851
        %vm853 = vcmp.eq.s32.totalorder %v259, %v852
        %vm854 = vcmp.eq.s32.totalorder %v260, %v852
        %vm855 = vcmp.eq.s32.totalorder %v261, %v852
        %vm856 = vcmp.eq.s32.totalorder %v262, %v852
        %vm857 = vcmp.eq.s32.totalorder %v263, %v852
        %vm858 = vcmp.eq.s32.totalorder %v264, %v852
        %vm859 = vcmp.eq.s32.totalorder %v265, %v852
        %vm860 = vcmp.eq.s32.totalorder %v266, %v852
        %vm861 = vcmp.eq.s32.totalorder %v267, %v852
        %vm862 = vcmp.eq.s32.totalorder %v268, %v852
        %vm863 = vcmp.eq.s32.totalorder %v269, %v852
        %vm864 = vcmp.eq.s32.totalorder %v270, %v852
        %vm865 = vcmp.eq.s32.totalorder %v271, %v852
        %vm866 = vcmp.eq.s32.totalorder %v272, %v852
        %vm867 = vcmp.eq.s32.totalorder %v273, %v852
        %vm868 = vcmp.eq.s32.totalorder %v274, %v852
        %vm869 = vcmp.eq.s32.totalorder %v275, %v852
        %vm870 = vcmp.eq.s32.totalorder %v276, %v852
        %vm871 = vcmp.eq.s32.totalorder %v277, %v852
        %vm872 = vcmp.eq.s32.totalorder %v278, %v852
        %vm873 = vcmp.eq.s32.totalorder %v279, %v852
        %vm874 = vcmp.eq.s32.totalorder %v280, %v852
        %vm875 = vcmp.eq.s32.totalorder %v281, %v852
        %vm876 = vcmp.eq.s32.totalorder %v282, %v852
        %vm877 = vcmp.eq.s32.totalorder %v283, %v852
        %vm878 = vcmp.eq.s32.totalorder %v284, %v852
        %vm879 = vcmp.eq.s32.totalorder %v285, %v852
        %vm880 = vcmp.eq.s32.totalorder %v286, %v852
        %vm881 = vcmp.eq.s32.totalorder %v287, %v852
        %vm882 = vcmp.eq.s32.totalorder %v288, %v852
        %vm883 = vcmp.eq.s32.totalorder %v289, %v852
        %vm884 = vcmp.eq.s32.totalorder %v290, %v852
        %v885 = vsel %vm853, 1, 0
        %v886 = vsel %vm854, 1, 0
        %v887 = vsel %vm855, 1, 0
        %v888 = vsel %vm856, 1, 0
        %v889 = vsel %vm857, 1, 0
        %v890 = vsel %vm858, 1, 0
        %v891 = vsel %vm859, 1, 0
        %v892 = vsel %vm860, 1, 0
        %v893 = vsel %vm861, 1, 0
        %v894 = vsel %vm862, 1, 0
        %v895 = vsel %vm863, 1, 0
        %v896 = vsel %vm864, 1, 0
        %v897 = vsel %vm865, 1, 0
        %v898 = vsel %vm866, 1, 0
        %v899 = vsel %vm867, 1, 0
        %v900 = vsel %vm868, 1, 0
        %v901 = vsel %vm869, 1, 0
        %v902 = vsel %vm870, 1, 0
        %v903 = vsel %vm871, 1, 0
        %v904 = vsel %vm872, 1, 0
        %v905 = vsel %vm873, 1, 0
        %v906 = vsel %vm874, 1, 0
        %v907 = vsel %vm875, 1, 0
        %v908 = vsel %vm876, 1, 0
        %v909 = vsel %vm877, 1, 0
        %v910 = vsel %vm878, 1, 0
        %v911 = vsel %vm879, 1, 0
        %v912 = vsel %vm880, 1, 0
        %v913 = vsel %vm881, 1, 0
        %v914 = vsel %vm882, 1, 0
        %v915 = vsel %vm883, 1, 0
        %v916 = vsel %vm884, 1, 0
        %v917 = vcvt.s32.f32 %v885
        %v918 = vcvt.s32.f32 %v886
        %v919 = vcvt.s32.f32 %v887
        %v920 = vcvt.s32.f32 %v888
        %v921 = vcvt.s32.f32 %v889
        %v922 = vcvt.s32.f32 %v890
        %v923 = vcvt.s32.f32 %v891
        %v924 = vcvt.s32.f32 %v892
        %v925 = vcvt.s32.f32 %v893
        %v926 = vcvt.s32.f32 %v894
        %v927 = vcvt.s32.f32 %v895
        %v928 = vcvt.s32.f32 %v896
        %v929 = vcvt.s32.f32 %v897
        %v930 = vcvt.s32.f32 %v898
        %v931 = vcvt.s32.f32 %v899
        %v932 = vcvt.s32.f32 %v900
        %v933 = vcvt.s32.f32 %v901
        %v934 = vcvt.s32.f32 %v902
        %v935 = vcvt.s32.f32 %v903
        %v936 = vcvt.s32.f32 %v904
        %v937 = vcvt.s32.f32 %v905
        %v938 = vcvt.s32.f32 %v906
        %v939 = vcvt.s32.f32 %v907
        %v940 = vcvt.s32.f32 %v908
        %v941 = vcvt.s32.f32 %v909
        %v942 = vcvt.s32.f32 %v910
        %v943 = vcvt.s32.f32 %v911
        %v944 = vcvt.s32.f32 %v912
        %v945 = vcvt.s32.f32 %v913
        %v946 = vcvt.s32.f32 %v914
        %v947 = vcvt.s32.f32 %v915
        %v948 = vcvt.s32.f32 %v916
        %v949 = vadd.f32 %v811, %v917
        %v950 = vadd.f32 %v812, %v918
        %v951 = vadd.f32 %v813, %v919
        %v952 = vadd.f32 %v814, %v920
        %v953 = vadd.f32 %v815, %v921
        %v954 = vadd.f32 %v816, %v922
        %v955 = vadd.f32 %v817, %v923
        %v956 = vadd.f32 %v818, %v924
        %v957 = vadd.f32 %v819, %v925
        %v958 = vadd.f32 %v820, %v926
        %v959 = vadd.f32 %v821, %v927
        %v960 = vadd.f32 %v822, %v928
        %v961 = vadd.f32 %v823, %v929
        %v962 = vadd.f32 %v824, %v930
        %v963 = vadd.f32 %v825, %v931
        %v964 = vadd.f32 %v826, %v932
        %v965 = vadd.f32 %v827, %v933
        %v966 = vadd.f32 %v828, %v934
        %v967 = vadd.f32 %v829, %v935
        %v968 = vadd.f32 %v830, %v936
        %v969 = vadd.f32 %v831, %v937
        %v970 = vadd.f32 %v832, %v938
        %v971 = vadd.f32 %v833, %v939
        %v972 = vadd.f32 %v834, %v940
        %v973 = vadd.f32 %v835, %v941
        %v974 = vadd.f32 %v836, %v942
        %v975 = vadd.f32 %v837, %v943
        %v976 = vadd.f32 %v838, %v944
        %v977 = vadd.f32 %v839, %v945
        %v978 = vadd.f32 %v840, %v946
        %v979 = vadd.f32 %v841, %v947
        %v980 = vadd.f32 %v842, %v948
        %v981 = vld [vmem:[#allocation2 + $0x5] sm:$0x1]
        %v982 = vmul.f32 %v981, 256.0
        %v983 = vfloor.f32 %v982
        %v984 = vcvt.f32.s32.to.zero.pseudo %v983
        %vm985 = vcmp.lt.s32.totalorder %v984, 255
        %v986 = vsel %vm985, %v984, 255
        %v987 = vlaneseq
        %v988 = vshrl.u32 %v987, 7
        %v989 = vsub.s32 0, %v988
        %v990 = vrot.slane %v986, %v989
        %vm991 = vcmp.eq.s32.totalorder %v259, %v990
        %vm992 = vcmp.eq.s32.totalorder %v260, %v990
        %vm993 = vcmp.eq.s32.totalorder %v261, %v990
        %vm994 = vcmp.eq.s32.totalorder %v262, %v990
        %vm995 = vcmp.eq.s32.totalorder %v263, %v990
        %vm996 = vcmp.eq.s32.totalorder %v264, %v990
        %vm997 = vcmp.eq.s32.totalorder %v265, %v990
        %vm998 = vcmp.eq.s32.totalorder %v266, %v990
        %vm999 = vcmp.eq.s32.totalorder %v267, %v990
        %vm1000 = vcmp.eq.s32.totalorder %v268, %v990
        %vm1001 = vcmp.eq.s32.totalorder %v269, %v990
        %vm1002 = vcmp.eq.s32.totalorder %v270, %v990
        %vm1003 = vcmp.eq.s32.totalorder %v271, %v990
        %vm1004 = vcmp.eq.s32.totalorder %v272, %v990
        %vm1005 = vcmp.eq.s32.totalorder %v273, %v990
        %vm1006 = vcmp.eq.s32.totalorder %v274, %v990
        %vm1007 = vcmp.eq.s32.totalorder %v275, %v990
        %vm1008 = vcmp.eq.s32.totalorder %v276, %v990
        %vm1009 = vcmp.eq.s32.totalorder %v277, %v990
        %vm1010 = vcmp.eq.s32.totalorder %v278, %v990
        %vm1011 = vcmp.eq.s32.totalorder %v279, %v990
        %vm1012 = vcmp.eq.s32.totalorder %v280, %v990
        %vm1013 = vcmp.eq.s32.totalorder %v281, %v990
        %vm1014 = vcmp.eq.s32.totalorder %v282, %v990
        %vm1015 = vcmp.eq.s32.totalorder %v283, %v990
        %vm1016 = vcmp.eq.s32.totalorder %v284, %v990
        %vm1017 = vcmp.eq.s32.totalorder %v285, %v990
        %vm1018 = vcmp.eq.s32.totalorder %v286, %v990
        %vm1019 = vcmp.eq.s32.totalorder %v287, %v990
        %vm1020 = vcmp.eq.s32.totalorder %v288, %v990
        %vm1021 = vcmp.eq.s32.totalorder %v289, %v990
        %vm1022 = vcmp.eq.s32.totalorder %v290, %v990
        %v1023 = vsel %vm991, 1, 0
        %v1024 = vsel %vm992, 1, 0
        %v1025 = vsel %vm993, 1, 0
        %v1026 = vsel %vm994, 1, 0
        %v1027 = vsel %vm995, 1, 0
        %v1028 = vsel %vm996, 1, 0
        %v1029 = vsel %vm997, 1, 0
        %v1030 = vsel %vm998, 1, 0
        %v1031 = vsel %vm999, 1, 0
        %v1032 = vsel %vm1000, 1, 0
        %v1033 = vsel %vm1001, 1, 0
        %v1034 = vsel %vm1002, 1, 0
        %v1035 = vsel %vm1003, 1, 0
        %v1036 = vsel %vm1004, 1, 0
        %v1037 = vsel %vm1005, 1, 0
        %v1038 = vsel %vm1006, 1, 0
        %v1039 = vsel %vm1007, 1, 0
        %v1040 = vsel %vm1008, 1, 0
        %v1041 = vsel %vm1009, 1, 0
        %v1042 = vsel %vm1010, 1, 0
        %v1043 = vsel %vm1011, 1, 0
        %v1044 = vsel %vm1012, 1, 0
        %v1045 = vsel %vm1013, 1, 0
        %v1046 = vsel %vm1014, 1, 0
        %v1047 = vsel %vm1015, 1, 0
        %v1048 = vsel %vm1016, 1, 0
        %v1049 = vsel %vm1017, 1, 0
        %v1050 = vsel %vm1018, 1, 0
        %v1051 = vsel %vm1019, 1, 0
        %v1052 = vsel %vm1020, 1, 0
        %v1053 = vsel %vm1021, 1, 0
        %v1054 = vsel %vm1022, 1, 0
        %v1055 = vcvt.s32.f32 %v1023
        %v1056 = vcvt.s32.f32 %v1024
        %v1057 = vcvt.s32.f32 %v1025
        %v1058 = vcvt.s32.f32 %v1026
        %v1059 = vcvt.s32.f32 %v1027
        %v1060 = vcvt.s32.f32 %v1028
        %v1061 = vcvt.s32.f32 %v1029
        %v1062 = vcvt.s32.f32 %v1030
        %v1063 = vcvt.s32.f32 %v1031
        %v1064 = vcvt.s32.f32 %v1032
        %v1065 = vcvt.s32.f32 %v1033
        %v1066 = vcvt.s32.f32 %v1034
        %v1067 = vcvt.s32.f32 %v1035
        %v1068 = vcvt.s32.f32 %v1036
        %v1069 = vcvt.s32.f32 %v1037
        %v1070 = vcvt.s32.f32 %v1038
        %v1071 = vcvt.s32.f32 %v1039
        %v1072 = vcvt.s32.f32 %v1040
        %v1073 = vcvt.s32.f32 %v1041
        %v1074 = vcvt.s32.f32 %v1042
        %v1075 = vcvt.s32.f32 %v1043
        %v1076 = vcvt.s32.f32 %v1044
        %v1077 = vcvt.s32.f32 %v1045
        %v1078 = vcvt.s32.f32 %v1046
        %v1079 = vcvt.s32.f32 %v1047
        %v1080 = vcvt.s32.f32 %v1048
        %v1081 = vcvt.s32.f32 %v1049
        %v1082 = vcvt.s32.f32 %v1050
        %v1083 = vcvt.s32.f32 %v1051
        %v1084 = vcvt.s32.f32 %v1052
        %v1085 = vcvt.s32.f32 %v1053
        %v1086 = vcvt.s32.f32 %v1054
        %v1087 = vadd.f32 %v949, %v1055
        %v1088 = vadd.f32 %v950, %v1056
        %v1089 = vadd.f32 %v951, %v1057
        %v1090 = vadd.f32 %v952, %v1058
        %v1091 = vadd.f32 %v953, %v1059
        %v1092 = vadd.f32 %v954, %v1060
        %v1093 = vadd.f32 %v955, %v1061
        %v1094 = vadd.f32 %v956, %v1062
        %v1095 = vadd.f32 %v957, %v1063
        %v1096 = vadd.f32 %v958, %v1064
        %v1097 = vadd.f32 %v959, %v1065
        %v1098 = vadd.f32 %v960, %v1066
        %v1099 = vadd.f32 %v961, %v1067
        %v1100 = vadd.f32 %v962, %v1068
        %v1101 = vadd.f32 %v963, %v1069
        %v1102 = vadd.f32 %v964, %v1070
        %v1103 = vadd.f32 %v965, %v1071
        %v1104 = vadd.f32 %v966, %v1072
        %v1105 = vadd.f32 %v967, %v1073
        %v1106 = vadd.f32 %v968, %v1074
        %v1107 = vadd.f32 %v969, %v1075
        %v1108 = vadd.f32 %v970, %v1076
        %v1109 = vadd.f32 %v971, %v1077
        %v1110 = vadd.f32 %v972, %v1078
        %v1111 = vadd.f32 %v973, %v1079
        %v1112 = vadd.f32 %v974, %v1080
        %v1113 = vadd.f32 %v975, %v1081
        %v1114 = vadd.f32 %v976, %v1082
        %v1115 = vadd.f32 %v977, %v1083
        %v1116 = vadd.f32 %v978, %v1084
        %v1117 = vadd.f32 %v979, %v1085
        %v1118 = vadd.f32 %v980, %v1086
        %v1119 = vld [vmem:[#allocation2 + $0x6] sm:$0x1]
        %v1120 = vmul.f32 %v1119, 256.0
        %v1121 = vfloor.f32 %v1120
        %v1122 = vcvt.f32.s32.to.zero.pseudo %v1121
        %vm1123 = vcmp.lt.s32.totalorder %v1122, 255
        %v1124 = vsel %vm1123, %v1122, 255
        %v1125 = vlaneseq
        %v1126 = vshrl.u32 %v1125, 7
        %v1127 = vsub.s32 0, %v1126
        %v1128 = vrot.slane %v1124, %v1127
        %vm1129 = vcmp.eq.s32.totalorder %v259, %v1128
        %vm1130 = vcmp.eq.s32.totalorder %v260, %v1128
        %vm1131 = vcmp.eq.s32.totalorder %v261, %v1128
        %vm1132 = vcmp.eq.s32.totalorder %v262, %v1128
        %vm1133 = vcmp.eq.s32.totalorder %v263, %v1128
        %vm1134 = vcmp.eq.s32.totalorder %v264, %v1128
        %vm1135 = vcmp.eq.s32.totalorder %v265, %v1128
        %vm1136 = vcmp.eq.s32.totalorder %v266, %v1128
        %vm1137 = vcmp.eq.s32.totalorder %v267, %v1128
        %vm1138 = vcmp.eq.s32.totalorder %v268, %v1128
        %vm1139 = vcmp.eq.s32.totalorder %v269, %v1128
        %vm1140 = vcmp.eq.s32.totalorder %v270, %v1128
        %vm1141 = vcmp.eq.s32.totalorder %v271, %v1128
        %vm1142 = vcmp.eq.s32.totalorder %v272, %v1128
        %vm1143 = vcmp.eq.s32.totalorder %v273, %v1128
        %vm1144 = vcmp.eq.s32.totalorder %v274, %v1128
        %vm1145 = vcmp.eq.s32.totalorder %v275, %v1128
        %vm1146 = vcmp.eq.s32.totalorder %v276, %v1128
        %vm1147 = vcmp.eq.s32.totalorder %v277, %v1128
        %vm1148 = vcmp.eq.s32.totalorder %v278, %v1128
        %vm1149 = vcmp.eq.s32.totalorder %v279, %v1128
        %vm1150 = vcmp.eq.s32.totalorder %v280, %v1128
        %vm1151 = vcmp.eq.s32.totalorder %v281, %v1128
        %vm1152 = vcmp.eq.s32.totalorder %v282, %v1128
        %vm1153 = vcmp.eq.s32.totalorder %v283, %v1128
        %vm1154 = vcmp.eq.s32.totalorder %v284, %v1128
        %vm1155 = vcmp.eq.s32.totalorder %v285, %v1128
        %vm1156 = vcmp.eq.s32.totalorder %v286, %v1128
        %vm1157 = vcmp.eq.s32.totalorder %v287, %v1128
        %vm1158 = vcmp.eq.s32.totalorder %v288, %v1128
        %vm1159 = vcmp.eq.s32.totalorder %v289, %v1128
        %vm1160 = vcmp.eq.s32.totalorder %v290, %v1128
        %v1161 = vsel %vm1129, 1, 0
        %v1162 = vsel %vm1130, 1, 0
        %v1163 = vsel %vm1131, 1, 0
        %v1164 = vsel %vm1132, 1, 0
        %v1165 = vsel %vm1133, 1, 0
        %v1166 = vsel %vm1134, 1, 0
        %v1167 = vsel %vm1135, 1, 0
        %v1168 = vsel %vm1136, 1, 0
        %v1169 = vsel %vm1137, 1, 0
        %v1170 = vsel %vm1138, 1, 0
        %v1171 = vsel %vm1139, 1, 0
        %v1172 = vsel %vm1140, 1, 0
        %v1173 = vsel %vm1141, 1, 0
        %v1174 = vsel %vm1142, 1, 0
        %v1175 = vsel %vm1143, 1, 0
        %v1176 = vsel %vm1144, 1, 0
        %v1177 = vsel %vm1145, 1, 0
        %v1178 = vsel %vm1146, 1, 0
        %v1179 = vsel %vm1147, 1, 0
        %v1180 = vsel %vm1148, 1, 0
        %v1181 = vsel %vm1149, 1, 0
        %v1182 = vsel %vm1150, 1, 0
        %v1183 = vsel %vm1151, 1, 0
        %v1184 = vsel %vm1152, 1, 0
        %v1185 = vsel %vm1153, 1, 0
        %v1186 = vsel %vm1154, 1, 0
        %v1187 = vsel %vm1155, 1, 0
        %v1188 = vsel %vm1156, 1, 0
        %v1189 = vsel %vm1157, 1, 0
        %v1190 = vsel %vm1158, 1, 0
        %v1191 = vsel %vm1159, 1, 0
        %v1192 = vsel %vm1160, 1, 0
        %v1193 = vcvt.s32.f32 %v1161
        %v1194 = vcvt.s32.f32 %v1162
        %v1195 = vcvt.s32.f32 %v1163
        %v1196 = vcvt.s32.f32 %v1164
        %v1197 = vcvt.s32.f32 %v1165
        %v1198 = vcvt.s32.f32 %v1166
        %v1199 = vcvt.s32.f32 %v1167
        %v1200 = vcvt.s32.f32 %v1168
        %v1201 = vcvt.s32.f32 %v1169
        %v1202 = vcvt.s32.f32 %v1170
        %v1203 = vcvt.s32.f32 %v1171
        %v1204 = vcvt.s32.f32 %v1172
        %v1205 = vcvt.s32.f32 %v1173
        %v1206 = vcvt.s32.f32 %v1174
        %v1207 = vcvt.s32.f32 %v1175
        %v1208 = vcvt.s32.f32 %v1176
        %v1209 = vcvt.s32.f32 %v1177
        %v1210 = vcvt.s32.f32 %v1178
        %v1211 = vcvt.s32.f32 %v1179
        %v1212 = vcvt.s32.f32 %v1180
        %v1213 = vcvt.s32.f32 %v1181
        %v1214 = vcvt.s32.f32 %v1182
        %v1215 = vcvt.s32.f32 %v1183
        %v1216 = vcvt.s32.f32 %v1184
        %v1217 = vcvt.s32.f32 %v1185
        %v1218 = vcvt.s32.f32 %v1186
        %v1219 = vcvt.s32.f32 %v1187
        %v1220 = vcvt.s32.f32 %v1188
        %v1221 = vcvt.s32.f32 %v1189
        %v1222 = vcvt.s32.f32 %v1190
        %v1223 = vcvt.s32.f32 %v1191
        %v1224 = vcvt.s32.f32 %v1192
        %v1225 = vadd.f32 %v1087, %v1193
        %v1226 = vadd.f32 %v1088, %v1194
        %v1227 = vadd.f32 %v1089, %v1195
        %v1228 = vadd.f32 %v1090, %v1196
        %v1229 = vadd.f32 %v1091, %v1197
        %v1230 = vadd.f32 %v1092, %v1198
        %v1231 = vadd.f32 %v1093, %v1199
        %v1232 = vadd.f32 %v1094, %v1200
        %v1233 = vadd.f32 %v1095, %v1201
        %v1234 = vadd.f32 %v1096, %v1202
        %v1235 = vadd.f32 %v1097, %v1203
        %v1236 = vadd.f32 %v1098, %v1204
        %v1237 = vadd.f32 %v1099, %v1205
        %v1238 = vadd.f32 %v1100, %v1206
        %v1239 = vadd.f32 %v1101, %v1207
        %v1240 = vadd.f32 %v1102, %v1208
        %v1241 = vadd.f32 %v1103, %v1209
        %v1242 = vadd.f32 %v1104, %v1210
        %v1243 = vadd.f32 %v1105, %v1211
        %v1244 = vadd.f32 %v1106, %v1212
        %v1245 = vadd.f32 %v1107, %v1213
        %v1246 = vadd.f32 %v1108, %v1214
        %v1247 = vadd.f32 %v1109, %v1215
        %v1248 = vadd.f32 %v1110, %v1216
        %v1249 = vadd.f32 %v1111, %v1217
        %v1250 = vadd.f32 %v1112, %v1218
        %v1251 = vadd.f32 %v1113, %v1219
        %v1252 = vadd.f32 %v1114, %v1220
        %v1253 = vadd.f32 %v1115, %v1221
        %v1254 = vadd.f32 %v1116, %v1222
        %v1255 = vadd.f32 %v1117, %v1223
        %v1256 = vadd.f32 %v1118, %v1224
        %v1257 = vld [vmem:[#allocation2 + $0x7] sm:$0x1]
        %v1258 = vmul.f32 %v1257, 256.0
        %v1259 = vfloor.f32 %v1258
        %v1260 = vcvt.f32.s32.to.zero.pseudo %v1259
        %vm1261 = vcmp.lt.s32.totalorder %v1260, 255
        %v1262 = vsel %vm1261, %v1260, 255
        %v1263 = vlaneseq
        %v1264 = vshrl.u32 %v1263, 7
        %v1265 = vsub.s32 0, %v1264
        %v1266 = vrot.slane %v1262, %v1265
        %vm1267 = vcmp.eq.s32.totalorder %v259, %v1266
        %vm1268 = vcmp.eq.s32.totalorder %v260, %v1266
        %vm1269 = vcmp.eq.s32.totalorder %v261, %v1266
        %vm1270 = vcmp.eq.s32.totalorder %v262, %v1266
        %vm1271 = vcmp.eq.s32.totalorder %v263, %v1266
        %vm1272 = vcmp.eq.s32.totalorder %v264, %v1266
        %vm1273 = vcmp.eq.s32.totalorder %v265, %v1266
        %vm1274 = vcmp.eq.s32.totalorder %v266, %v1266
        %vm1275 = vcmp.eq.s32.totalorder %v267, %v1266
        %vm1276 = vcmp.eq.s32.totalorder %v268, %v1266
        %vm1277 = vcmp.eq.s32.totalorder %v269, %v1266
        %vm1278 = vcmp.eq.s32.totalorder %v270, %v1266
        %vm1279 = vcmp.eq.s32.totalorder %v271, %v1266
        %vm1280 = vcmp.eq.s32.totalorder %v272, %v1266
        %vm1281 = vcmp.eq.s32.totalorder %v273, %v1266
        %vm1282 = vcmp.eq.s32.totalorder %v274, %v1266
        %vm1283 = vcmp.eq.s32.totalorder %v275, %v1266
        %vm1284 = vcmp.eq.s32.totalorder %v276, %v1266
        %vm1285 = vcmp.eq.s32.totalorder %v277, %v1266
        %vm1286 = vcmp.eq.s32.totalorder %v278, %v1266
        %vm1287 = vcmp.eq.s32.totalorder %v279, %v1266
        %vm1288 = vcmp.eq.s32.totalorder %v280, %v1266
        %vm1289 = vcmp.eq.s32.totalorder %v281, %v1266
        %vm1290 = vcmp.eq.s32.totalorder %v282, %v1266
        %vm1291 = vcmp.eq.s32.totalorder %v283, %v1266
        %vm1292 = vcmp.eq.s32.totalorder %v284, %v1266
        %vm1293 = vcmp.eq.s32.totalorder %v285, %v1266
        %vm1294 = vcmp.eq.s32.totalorder %v286, %v1266
        %vm1295 = vcmp.eq.s32.totalorder %v287, %v1266
        %vm1296 = vcmp.eq.s32.totalorder %v288, %v1266
        %vm1297 = vcmp.eq.s32.totalorder %v289, %v1266
        %vm1298 = vcmp.eq.s32.totalorder %v290, %v1266
        %v1299 = vsel %vm1267, 1, 0
        %v1300 = vsel %vm1268, 1, 0
        %v1301 = vsel %vm1269, 1, 0
        %v1302 = vsel %vm1270, 1, 0
        %v1303 = vsel %vm1271, 1, 0
        %v1304 = vsel %vm1272, 1, 0
        %v1305 = vsel %vm1273, 1, 0
        %v1306 = vsel %vm1274, 1, 0
        %v1307 = vsel %vm1275, 1, 0
        %v1308 = vsel %vm1276, 1, 0
        %v1309 = vsel %vm1277, 1, 0
        %v1310 = vsel %vm1278, 1, 0
        %v1311 = vsel %vm1279, 1, 0
        %v1312 = vsel %vm1280, 1, 0
        %v1313 = vsel %vm1281, 1, 0
        %v1314 = vsel %vm1282, 1, 0
        %v1315 = vsel %vm1283, 1, 0
        %v1316 = vsel %vm1284, 1, 0
        %v1317 = vsel %vm1285, 1, 0
        %v1318 = vsel %vm1286, 1, 0
        %v1319 = vsel %vm1287, 1, 0
        %v1320 = vsel %vm1288, 1, 0
        %v1321 = vsel %vm1289, 1, 0
        %v1322 = vsel %vm1290, 1, 0
        %v1323 = vsel %vm1291, 1, 0
        %v1324 = vsel %vm1292, 1, 0
        %v1325 = vsel %vm1293, 1, 0
        %v1326 = vsel %vm1294, 1, 0
        %v1327 = vsel %vm1295, 1, 0
        %v1328 = vsel %vm1296, 1, 0
        %v1329 = vsel %vm1297, 1, 0
        %v1330 = vsel %vm1298, 1, 0
        %v1331 = vcvt.s32.f32 %v1299
        %v1332 = vcvt.s32.f32 %v1300
        %v1333 = vcvt.s32.f32 %v1301
        %v1334 = vcvt.s32.f32 %v1302
        %v1335 = vcvt.s32.f32 %v1303
        %v1336 = vcvt.s32.f32 %v1304
        %v1337 = vcvt.s32.f32 %v1305
        %v1338 = vcvt.s32.f32 %v1306
        %v1339 = vcvt.s32.f32 %v1307
        %v1340 = vcvt.s32.f32 %v1308
        %v1341 = vcvt.s32.f32 %v1309
        %v1342 = vcvt.s32.f32 %v1310
        %v1343 = vcvt.s32.f32 %v1311
        %v1344 = vcvt.s32.f32 %v1312
        %v1345 = vcvt.s32.f32 %v1313
        %v1346 = vcvt.s32.f32 %v1314
        %v1347 = vcvt.s32.f32 %v1315
        %v1348 = vcvt.s32.f32 %v1316
        %v1349 = vcvt.s32.f32 %v1317
        %v1350 = vcvt.s32.f32 %v1318
        %v1351 = vcvt.s32.f32 %v1319
        %v1352 = vcvt.s32.f32 %v1320
        %v1353 = vcvt.s32.f32 %v1321
        %v1354 = vcvt.s32.f32 %v1322
        %v1355 = vcvt.s32.f32 %v1323
        %v1356 = vcvt.s32.f32 %v1324
        %v1357 = vcvt.s32.f32 %v1325
        %v1358 = vcvt.s32.f32 %v1326
        %v1359 = vcvt.s32.f32 %v1327
        %v1360 = vcvt.s32.f32 %v1328
        %v1361 = vcvt.s32.f32 %v1329
        %v1362 = vcvt.s32.f32 %v1330
        %v1363 = vadd.f32 %v1225, %v1331
        %v1364 = vadd.f32 %v1226, %v1332
        %v1365 = vadd.f32 %v1227, %v1333
        %v1366 = vadd.f32 %v1228, %v1334
        %v1367 = vadd.f32 %v1229, %v1335
        %v1368 = vadd.f32 %v1230, %v1336
        %v1369 = vadd.f32 %v1231, %v1337
        %v1370 = vadd.f32 %v1232, %v1338
        %v1371 = vadd.f32 %v1233, %v1339
        %v1372 = vadd.f32 %v1234, %v1340
        %v1373 = vadd.f32 %v1235, %v1341
        %v1374 = vadd.f32 %v1236, %v1342
        %v1375 = vadd.f32 %v1237, %v1343
        %v1376 = vadd.f32 %v1238, %v1344
        %v1377 = vadd.f32 %v1239, %v1345
        %v1378 = vadd.f32 %v1240, %v1346
        %v1379 = vadd.f32 %v1241, %v1347
        %v1380 = vadd.f32 %v1242, %v1348
        %v1381 = vadd.f32 %v1243, %v1349
        %v1382 = vadd.f32 %v1244, %v1350
        %v1383 = vadd.f32 %v1245, %v1351
        %v1384 = vadd.f32 %v1246, %v1352
        %v1385 = vadd.f32 %v1247, %v1353
        %v1386 = vadd.f32 %v1248, %v1354
        %v1387 = vadd.f32 %v1249, %v1355
        %v1388 = vadd.f32 %v1250, %v1356
        %v1389 = vadd.f32 %v1251, %v1357
        %v1390 = vadd.f32 %v1252, %v1358
        %v1391 = vadd.f32 %v1253, %v1359
        %v1392 = vadd.f32 %v1254, %v1360
        %v1393 = vadd.f32 %v1255, %v1361
        %v1394 = vadd.f32 %v1256, %v1362
        %p1395 = scmp.eq.s32.totalorder %s29, 0
        // Predicated region
        $region41: #{tpu_custom_call.1} parent=31 // pred_check
          %p1396 = pneg %p1395
        $region42: #{tpu_custom_call.1} parent=31 // pred_check_branch
          %1398 = sbr.rel (%p1396) target = $region44
        $region43: #{tpu_custom_call.1} parent=31 // pred_region
          %1399 = vst [vmem:[%s230] sm:$0xff] 0.0
          %1400 = vst [vmem:[%s230 + $0x8] sm:$0xff] 0.0
          %1401 = vst [vmem:[%s230 + $0x10] sm:$0xff] 0.0
          %1402 = vst [vmem:[%s230 + $0x18] sm:$0xff] 0.0
          %1403 = vst [vmem:[%s230 + $0x20] sm:$0xff] 0.0
          %1404 = vst [vmem:[%s230 + $0x28] sm:$0xff] 0.0
          %1405 = vst [vmem:[%s230 + $0x30] sm:$0xff] 0.0
          %1406 = vst [vmem:[%s230 + $0x38] sm:$0xff] 0.0
          %1407 = vst [vmem:[%s230 + $0x40] sm:$0xff] 0.0
          %1408 = vst [vmem:[%s230 + $0x48] sm:$0xff] 0.0
          %1409 = vst [vmem:[%s230 + $0x50] sm:$0xff] 0.0
          %1410 = vst [vmem:[%s230 + $0x58] sm:$0xff] 0.0
          %1411 = vst [vmem:[%s230 + $0x60] sm:$0xff] 0.0
          %1412 = vst [vmem:[%s230 + $0x68] sm:$0xff] 0.0
          %1413 = vst [vmem:[%s230 + $0x70] sm:$0xff] 0.0
          %1414 = vst [vmem:[%s230 + $0x78] sm:$0xff] 0.0
          %1415 = vst [vmem:[%s230 + $0x80] sm:$0xff] 0.0
          %1416 = vst [vmem:[%s230 + $0x88] sm:$0xff] 0.0
          %1417 = vst [vmem:[%s230 + $0x90] sm:$0xff] 0.0
          %1418 = vst [vmem:[%s230 + $0x98] sm:$0xff] 0.0
          %1419 = vst [vmem:[%s230 + $0xa0] sm:$0xff] 0.0
          %1420 = vst [vmem:[%s230 + $0xa8] sm:$0xff] 0.0
          %1421 = vst [vmem:[%s230 + $0xb0] sm:$0xff] 0.0
          %1422 = vst [vmem:[%s230 + $0xb8] sm:$0xff] 0.0
          %1423 = vst [vmem:[%s230 + $0xc0] sm:$0xff] 0.0
          %1424 = vst [vmem:[%s230 + $0xc8] sm:$0xff] 0.0
          %1425 = vst [vmem:[%s230 + $0xd0] sm:$0xff] 0.0
          %1426 = vst [vmem:[%s230 + $0xd8] sm:$0xff] 0.0
          %1427 = vst [vmem:[%s230 + $0xe0] sm:$0xff] 0.0
          %1428 = vst [vmem:[%s230 + $0xe8] sm:$0xff] 0.0
          %1429 = vst [vmem:[%s230 + $0xf0] sm:$0xff] 0.0
          %1430 = vst [vmem:[%s230 + $0xf8] sm:$0xff] 0.0
        $region44: #{tpu_custom_call.1} parent=31 // pred_fallthru
          _
        %v1431 = vld [vmem:[%s230] sm:$0xff]
        %v1432 = vld [vmem:[%s230 + $0x8] sm:$0xff]
        %v1433 = vld [vmem:[%s230 + $0x10] sm:$0xff]
        %v1434 = vld [vmem:[%s230 + $0x18] sm:$0xff]
        %v1435 = vld [vmem:[%s230 + $0x20] sm:$0xff]
        %v1436 = vld [vmem:[%s230 + $0x28] sm:$0xff]
        %v1437 = vld [vmem:[%s230 + $0x30] sm:$0xff]
        %v1438 = vld [vmem:[%s230 + $0x38] sm:$0xff]
        %v1439 = vld [vmem:[%s230 + $0x40] sm:$0xff]
        %v1440 = vld [vmem:[%s230 + $0x48] sm:$0xff]
        %v1441 = vld [vmem:[%s230 + $0x50] sm:$0xff]
        %v1442 = vld [vmem:[%s230 + $0x58] sm:$0xff]
        %v1443 = vld [vmem:[%s230 + $0x60] sm:$0xff]
        %v1444 = vld [vmem:[%s230 + $0x68] sm:$0xff]
        %v1445 = vld [vmem:[%s230 + $0x70] sm:$0xff]
        %v1446 = vld [vmem:[%s230 + $0x78] sm:$0xff]
        %v1447 = vld [vmem:[%s230 + $0x80] sm:$0xff]
        %v1448 = vld [vmem:[%s230 + $0x88] sm:$0xff]
        %v1449 = vld [vmem:[%s230 + $0x90] sm:$0xff]
        %v1450 = vld [vmem:[%s230 + $0x98] sm:$0xff]
        %v1451 = vld [vmem:[%s230 + $0xa0] sm:$0xff]
        %v1452 = vld [vmem:[%s230 + $0xa8] sm:$0xff]
        %v1453 = vld [vmem:[%s230 + $0xb0] sm:$0xff]
        %v1454 = vld [vmem:[%s230 + $0xb8] sm:$0xff]
        %v1455 = vld [vmem:[%s230 + $0xc0] sm:$0xff]
        %v1456 = vld [vmem:[%s230 + $0xc8] sm:$0xff]
        %v1457 = vld [vmem:[%s230 + $0xd0] sm:$0xff]
        %v1458 = vld [vmem:[%s230 + $0xd8] sm:$0xff]
        %v1459 = vld [vmem:[%s230 + $0xe0] sm:$0xff]
        %v1460 = vld [vmem:[%s230 + $0xe8] sm:$0xff]
        %v1461 = vld [vmem:[%s230 + $0xf0] sm:$0xff]
        %v1462 = vld [vmem:[%s230 + $0xf8] sm:$0xff]
        %v1463 = vadd.f32 %v1431, %v1363
        %v1464 = vadd.f32 %v1432, %v1364
        %v1465 = vadd.f32 %v1433, %v1365
        %v1466 = vadd.f32 %v1434, %v1366
        %v1467 = vadd.f32 %v1435, %v1367
        %v1468 = vadd.f32 %v1436, %v1368
        %v1469 = vadd.f32 %v1437, %v1369
        %v1470 = vadd.f32 %v1438, %v1370
        %v1471 = vadd.f32 %v1439, %v1371
        %v1472 = vadd.f32 %v1440, %v1372
        %v1473 = vadd.f32 %v1441, %v1373
        %v1474 = vadd.f32 %v1442, %v1374
        %v1475 = vadd.f32 %v1443, %v1375
        %v1476 = vadd.f32 %v1444, %v1376
        %v1477 = vadd.f32 %v1445, %v1377
        %v1478 = vadd.f32 %v1446, %v1378
        %v1479 = vadd.f32 %v1447, %v1379
        %v1480 = vadd.f32 %v1448, %v1380
        %v1481 = vadd.f32 %v1449, %v1381
        %v1482 = vadd.f32 %v1450, %v1382
        %v1483 = vadd.f32 %v1451, %v1383
        %v1484 = vadd.f32 %v1452, %v1384
        %v1485 = vadd.f32 %v1453, %v1385
        %v1486 = vadd.f32 %v1454, %v1386
        %v1487 = vadd.f32 %v1455, %v1387
        %v1488 = vadd.f32 %v1456, %v1388
        %v1489 = vadd.f32 %v1457, %v1389
        %v1490 = vadd.f32 %v1458, %v1390
        %v1491 = vadd.f32 %v1459, %v1391
        %v1492 = vadd.f32 %v1460, %v1392
        %v1493 = vadd.f32 %v1461, %v1393
        %v1494 = vadd.f32 %v1462, %v1394
        %1495 = vst [vmem:[%s230] sm:$0xff] %v1463
        %1496 = vst [vmem:[%s230 + $0x8] sm:$0xff] %v1464
        %1497 = vst [vmem:[%s230 + $0x10] sm:$0xff] %v1465
        %1498 = vst [vmem:[%s230 + $0x18] sm:$0xff] %v1466
        %1499 = vst [vmem:[%s230 + $0x20] sm:$0xff] %v1467
        %1500 = vst [vmem:[%s230 + $0x28] sm:$0xff] %v1468
        %1501 = vst [vmem:[%s230 + $0x30] sm:$0xff] %v1469
        %1502 = vst [vmem:[%s230 + $0x38] sm:$0xff] %v1470
        %1503 = vst [vmem:[%s230 + $0x40] sm:$0xff] %v1471
        %1504 = vst [vmem:[%s230 + $0x48] sm:$0xff] %v1472
        %1505 = vst [vmem:[%s230 + $0x50] sm:$0xff] %v1473
        %1506 = vst [vmem:[%s230 + $0x58] sm:$0xff] %v1474
        %1507 = vst [vmem:[%s230 + $0x60] sm:$0xff] %v1475
        %1508 = vst [vmem:[%s230 + $0x68] sm:$0xff] %v1476
        %1509 = vst [vmem:[%s230 + $0x70] sm:$0xff] %v1477
        %1510 = vst [vmem:[%s230 + $0x78] sm:$0xff] %v1478
        %1511 = vst [vmem:[%s230 + $0x80] sm:$0xff] %v1479
        %1512 = vst [vmem:[%s230 + $0x88] sm:$0xff] %v1480
        %1513 = vst [vmem:[%s230 + $0x90] sm:$0xff] %v1481
        %1514 = vst [vmem:[%s230 + $0x98] sm:$0xff] %v1482
        %1515 = vst [vmem:[%s230 + $0xa0] sm:$0xff] %v1483
        %1516 = vst [vmem:[%s230 + $0xa8] sm:$0xff] %v1484
        %1517 = vst [vmem:[%s230 + $0xb0] sm:$0xff] %v1485
        %1518 = vst [vmem:[%s230 + $0xb8] sm:$0xff] %v1486
        %1519 = vst [vmem:[%s230 + $0xc0] sm:$0xff] %v1487
        %1520 = vst [vmem:[%s230 + $0xc8] sm:$0xff] %v1488
        %1521 = vst [vmem:[%s230 + $0xd0] sm:$0xff] %v1489
        %1522 = vst [vmem:[%s230 + $0xd8] sm:$0xff] %v1490
        %1523 = vst [vmem:[%s230 + $0xe0] sm:$0xff] %v1491
        %1524 = vst [vmem:[%s230 + $0xe8] sm:$0xff] %v1492
        %1525 = vst [vmem:[%s230 + $0xf0] sm:$0xff] %v1493
        %1526 = vst [vmem:[%s230 + $0xf8] sm:$0xff] %v1494
        %s1527 = sand.u32 %s123, 1
        %s1528 = scalar_lea.sflag [#allocation6], %s1527
        %s1529 = sand.u32 %s123, 1
        %s1530 = smul.addr %s1529, 256
        %s1531 = scalar_lea.vmem [#allocation9], %s1530
        // Predicated region
        $region45: #{tpu_custom_call.1} parent=31 // pred_check
          %p1532 = pneg %p133
        $region46: #{tpu_custom_call.1} parent=31 // pred_check_branch
          %1534 = sbr.rel (%p1532) target = $region48
        $region47: #{tpu_custom_call.1} parent=31 // pred_region
          %s1536 = ssub.s32 4096, 4096
          %1537 = vsyncadd %s1528, %s1536
          %s1538 = smul.addr %s28, 32
          %s1539 = smul.addr %s27, 32
          %s1540 = sadd.s32 %s1538, %s1539
          %s1541 = smul.addr %s1540, 128
          %s1542 = scalar_lea.hbm %s3, %s1541
          %s1543 = sshll.u32 %s1531, 4
          %s1544 = int_to_ptr.vmem [resolvable:$true] %s1543
          %1549 = dma.vmem_to_hbm [thread:$0]  %s1544, 4096, %s1542, %s1528, 128, 128, 8
        $region48: #{tpu_custom_call.1} parent=31 // pred_fallthru
          _
      $region32: #{tpu_custom_call.1} parent=5 // pred_fallthru
        _
      %p1550 = scmp.le.s32.totalorder 2, %s17
      // Predicated region
      $region49: #{tpu_custom_call.1} parent=5 // pred_check
        %p1551 = pneg %p1550
      $region50: #{tpu_custom_call.1} parent=5 // pred_check_branch
        %1553 = sbr.rel (%p1551) target = $region52
      $region51: #{tpu_custom_call.1} parent=5 // pred_region
        %s1554 = ssub.s32 %s17, 2
        // Predicated region
        $region53: #{tpu_custom_call.1} parent=51 // pred_check
          %p1555 = pneg %p139
        $region54: #{tpu_custom_call.1} parent=51 // pred_check_branch
          %1557 = sbr.rel (%p1555) target = $region56
        $region55: #{tpu_custom_call.1} parent=51 // pred_region
          %s1558 = sand.u32 %s124, 1
          %s1559 = scalar_lea.sflag [#allocation6], %s1558
          %s1560 = sand.u32 %s124, 1
          %s1561 = smul.addr %s1560, 256
          %s1562 = scalar_lea.vmem [#allocation9], %s1561
          %1563 = dma.done %s1559, 4096
        $region56: #{tpu_custom_call.1} parent=51 // pred_fallthru
          _
      $region52: #{tpu_custom_call.1} parent=5 // pred_fallthru
        _
    $region6: #{tpu_custom_call.1} parent=1 // loop_footer
      %s21 = sadd.s32 1, %s17
    $region7: #{tpu_custom_call.1} parent=1 // loop_footer_branch
      %16 = sbr.rel target = $region3
    $region8: #{tpu_custom_call.1} parent=1 // loop_exit
      _
    %1564 = vsyncpa [#allocation5], 1
    %s1565 = scalar_lea.sflag [#allocation5], 1
    %1566 = vsyncpa %s1565, 1
    %1567 = vsyncpa [#allocation6], 1
    %s1568 = scalar_lea.sflag [#allocation6], 1
    %1569 = vsyncpa %s1568, 1
    %1570 = vsyncpa [#allocation7], 1
    %s1571 = scalar_lea.sflag [#allocation7], 1
    %1572 = vsyncpa %s1571, 1

</llo_original>
